<compile_context>
chip_gen: v7x
topology: tpu7x:2x2x1
jax: 0.10.0
libtpu: 0.0.40
codegen_flags: <defaults>
</compile_context>

<pallas_src>
import functools
import numpy as np
import jax
import jax.numpy as jnp
from jax.experimental import pallas as pl
from jax.experimental.pallas import tpu as pltpu

_BN_EPS = 1e-5


def _round_up(x, m):
    return (x + m - 1) // m * m


def _pick_tile(total, cands):
    for c in cands:
        if total % c == 0:
            return c
    return total


# ----------------------------- Pallas kernels -----------------------------

def _conv_kernel(*refs, taps, tm, tk, has_bias, has_skip, has_bn, relu, relu_before_skip):
    """Fused conv-as-matmul kernel.

    Grid = (Cout tiles, K tiles). refs = (A, W, [bias], [skip], [bn_scale], [bn_shift], out, acc).
    A is the whole (rows, Kp) activation matrix resident in VMEM; each static tap `d` reads the
    row-window A[d : d+tm] (shift-trick im2col) and accumulates A_tap @ W[tap] into the f32
    accumulator.  Epilogue (bias/ReLU/skip/BN) runs once at the last K step.
    """
    refs = list(refs)
    a_ref, w_ref = refs[0], refs[1]
    idx = 2
    b_ref = s_ref = bns_ref = bnt_ref = None
    if has_bias:
        b_ref = refs[idx]; idx += 1
    if has_skip:
        s_ref = refs[idx]; idx += 1
    if has_bn:
        bns_ref = refs[idx]; bnt_ref = refs[idx + 1]; idx += 2
    o_ref, acc_ref = refs[idx], refs[idx + 1]

    k = pl.program_id(1)

    @pl.when(k == 0)
    def _():
        acc_ref[...] = jnp.zeros_like(acc_ref)

    col = pl.multiple_of(k * tk, tk)
    psum = None
    for t, d in enumerate(taps):
        a = a_ref[pl.ds(d, tm), pl.ds(col, tk)]
        contrib = jnp.dot(a, w_ref[t], preferred_element_type=jnp.float32)
        psum = contrib if psum is None else psum + contrib
    acc_ref[...] += psum

    @pl.when(k == pl.num_programs(1) - 1)
    def _():
        r = acc_ref[...]
        if has_bias:
            r = r + b_ref[...]
        if relu and relu_before_skip:
            r = jnp.maximum(r, 0.0)
        if has_skip:
            r = r + s_ref[...]
        if relu and not relu_before_skip:
            r = jnp.maximum(r, 0.0)
        if has_bn:
            r = r * bns_ref[...] + bnt_ref[...]
        o_ref[...] = r.astype(o_ref.dtype)


def _maxpool_kernel(p00_ref, p01_ref, p10_ref, p11_ref, o_ref):
    # 3x3/2 max-pool from 4 parity-phase views; all slices are static & contiguous.
    oh, ow = o_ref.shape[1], o_ref.shape[2]

    def win(ref, a, b):
        return ref[:, a:a + oh, b:b + ow, :]

    m = win(p00_ref, 0, 0)
    for ref, a, b in ((p01_ref, 0, 0), (p00_ref, 0, 1),
                      (p10_ref, 0, 0), (p11_ref, 0, 0), (p10_ref, 0, 1),
                      (p00_ref, 1, 0), (p01_ref, 1, 0), (p00_ref, 1, 1)):
        m = jnp.maximum(m, win(ref, a, b))
    o_ref[...] = m


# ----------------------------- fused matmul wrapper -----------------------------

def _fused_matmul(A, Wt, taps, Mp, *, bias=None, skip=None, bn=None,
                  relu=False, relu_before_skip=False):
    """(rows,Kp) bf16 A (VMEM resident) x (T,Kp,Np) bf16 weights -> (Mp,Np) f32 with fused epilogue."""
    Ar, Kp = A.shape
    T, Kp2, Np = Wt.shape
    assert Kp == Kp2
    tn = Np if Np <= 512 else _pick_tile(Np, (512, 256, 128))
    tk = 256 if Kp % 256 == 0 else 128
    grid = (Np // tn, Kp // tk)

    has_bias = bias is not None
    has_skip = skip is not None
    has_bn = bn is not None

    kernel = functools.partial(
        _conv_kernel, taps=tuple(int(t) for t in taps), tm=Mp, tk=tk,
        has_bias=has_bias, has_skip=has_skip, has_bn=has_bn,
        relu=relu, relu_before_skip=relu_before_skip)

    in_specs = [pl.BlockSpec((Ar, Kp), lambda j, k: (0, 0)),       # whole A, fetched once
                pl.BlockSpec((T, tk, tn), lambda j, k: (0, k, j))]  # per-(k,j) weight block
    args = [A, Wt]
    if has_bias:
        in_specs.append(pl.BlockSpec((1, tn), lambda j, k: (0, j))); args.append(bias)
    if has_skip:
        in_specs.append(pl.BlockSpec((Mp, tn), lambda j, k: (0, j))); args.append(skip)
    if has_bn:
        in_specs.append(pl.BlockSpec((1, tn), lambda j, k: (0, j))); args.append(bn[0])
        in_specs.append(pl.BlockSpec((1, tn), lambda j, k: (0, j))); args.append(bn[1])

    out = pl.pallas_call(
        kernel,
        out_shape=jax.ShapeDtypeStruct((Mp, Np), jnp.float32),
        grid_spec=pltpu.PrefetchScalarGridSpec(
            num_scalar_prefetch=0,
            grid=grid,
            in_specs=in_specs,
            out_specs=pl.BlockSpec((Mp, tn), lambda j, k: (0, j)),
            scratch_shapes=[pltpu.VMEM((Mp, tn), jnp.float32)]),
        compiler_params=pltpu.CompilerParams(
            dimension_semantics=("parallel", "arbitrary")),
    )(*args)
    return out


def _prep_vec(v, np_):
    return jnp.pad(v, (0, np_ - v.shape[0])).reshape(1, np_).astype(jnp.float32)


# ----------------------------- convolution wrappers -----------------------------

@functools.partial(jax.jit, static_argnames=("relu", "relu_before_skip"))
def conv1x1(x, w, b, *, relu=False, skip=None, relu_before_skip=False, bn=None):
    N, H, Wd, Cin = x.shape
    Cout = w.shape[-1]
    M = N * H * Wd
    Mp = _round_up(M, 8)
    Kp = _round_up(Cin, 128)
    Np = _round_up(Cout, 128)
    A = jnp.pad(x.reshape(M, Cin), ((0, Mp - M), (0, Kp - Cin))).astype(jnp.bfloat16)
    Wt = jnp.pad(w.reshape(1, Cin, Cout),
                 ((0, 0), (0, Kp - Cin), (0, Np - Cout))).astype(jnp.bfloat16)
    bias = _prep_vec(b, Np)
    skip2 = None
    if skip is not None:
        s2 = skip.reshape(M, skip.shape[-1])
        skip2 = jnp.pad(s2, ((0, Mp - M), (0, Np - s2.shape[1])))
    bn2 = None if bn is None else (_prep_vec(bn[0], Np), _prep_vec(bn[1], Np))
    out = _fused_matmul(A, Wt, (0,), Mp, bias=bias, skip=skip2, bn=bn2,
                        relu=relu, relu_before_skip=relu_before_skip)
    return out[:M, :Cout].reshape(N, H, Wd, Cout)


@functools.partial(jax.jit, static_argnames=("relu", "relu_before_skip"))
def conv3x3_s1(x, w, b, *, relu=False, skip=None, relu_before_skip=False, bn=None):
    """'same' 3x3 conv via the shift trick: no im2col materialization, 9 taps fused in-kernel."""
    N, H, Wd, Cin = x.shape
    Cout = w.shape[-1]
    Hp, Wp = H + 2, Wd + 2
    Rp = N * Hp * Wp
    Mp = _round_up(Rp, 8)
    Kp = _round_up(Cin, 128)
    Np = _round_up(Cout, 128)
    taps = tuple(di * Wp + dj for di in range(3) for dj in range(3))
    max_d = 2 * Wp + 2
    top = Wp + 1
    bottom = (Mp - Rp) + (Wp + 1)
    bottom += (-(top + Rp + bottom)) % 8
    xp = jnp.pad(x, ((0, 0), (1, 1), (1, 1), (0, 0)))
    A = jnp.pad(xp.reshape(Rp, Cin), ((top, bottom), (0, Kp - Cin))).astype(jnp.bfloat16)
    assert A.shape[0] >= Mp + max_d
    Wt = jnp.pad(w.reshape(9, Cin, Cout),
                 ((0, 0), (0, Kp - Cin), (0, Np - Cout))).astype(jnp.bfloat16)
    bias = _prep_vec(b, Np)
    skip2 = None
    if skip is not None:
        sp = jnp.pad(skip, ((0, 0), (1, 1), (1, 1), (0, 0))).reshape(Rp, skip.shape[-1])
        skip2 = jnp.pad(sp, ((0, Mp - Rp), (0, Np - sp.shape[1])))
    bn2 = None if bn is None else (_prep_vec(bn[0], Np), _prep_vec(bn[1], Np))
    out = _fused_matmul(A, Wt, taps, Mp, bias=bias, skip=skip2, bn=bn2,
                        relu=relu, relu_before_skip=relu_before_skip)
    out = out[:Rp, :Cout].reshape(N, Hp, Wp, Cout)[:, 1:1 + H, 1:1 + Wd, :]
    return out


@functools.partial(jax.jit, static_argnames=("stride", "padding", "relu"))
def conv_im2col(x, w, b, *, stride, padding, relu=False):
    """Classic im2col path (only used for the stride-2 convs: stem 7x7/2, 3x3/2 bottlenecks)."""
    N, H, Wd, Cin = x.shape
    KH, KW, _, Cout = w.shape
    OH = (H + 2 * padding - KH) // stride + 1
    OW = (Wd + 2 * padding - KW) // stride + 1
    xp = jnp.pad(x, ((0, 0), (padding, padding), (padding, padding), (0, 0)))
    cols = []
    for i in range(KH):
        for j in range(KW):
            cols.append(xp[:, i:i + stride * (OH - 1) + 1:stride,
                           j:j + stride * (OW - 1) + 1:stride, :])
    M = N * OH * OW
    K = KH * KW * Cin
    A = jnp.stack(cols, axis=3).reshape(M, K)
    Mp = _round_up(M, 8)
    Kp = _round_up(K, 128)
    Np = _round_up(Cout, 128)
    A = jnp.pad(A, ((0, Mp - M), (0, Kp - K))).astype(jnp.bfloat16)
    Wt = jnp.pad(w.reshape(1, K, Cout), ((0, 0), (0, Kp - K), (0, Np - Cout))).astype(jnp.bfloat16)
    bias = _prep_vec(b, Np)
    out = _fused_matmul(A, Wt, (0,), Mp, bias=bias, relu=relu)
    return out[:M, :Cout].reshape(N, OH, OW, Cout)


# ----------------------------- max-pool -----------------------------

@jax.jit
def maxpool_3x3_s2_p1(x):
    N, H, Wd, C = x.shape
    OH = (H - 1) // 2 + 1
    OW = (Wd - 1) // 2 + 1
    xp = jnp.pad(x, ((0, 0), (1, 1), (1, 1), (0, 0)), constant_values=-3.0e38)
    phases = [xp[:, a::2, b::2, :] for a in (0, 1) for b in (0, 1)]
    out = pl.pallas_call(
        _maxpool_kernel,
        out_shape=jax.ShapeDtypeStruct((N, OH, OW, C), x.dtype),
    )(*phases)
    return out


# ----------------------------- bilinear 2x upsample (align_corners=True) -----------------------------

def _interp_matrix(in_size, out_size):
    R = np.zeros((out_size, in_size), np.float32)
    if in_size == 1:
        R[:, 0] = 1.0
        return R
    src = np.arange(out_size, dtype=np.float64) * (in_size - 1) / (out_size - 1)
    i0 = np.clip(np.floor(src), 0, in_size - 1).astype(np.int64)
    i1 = np.minimum(i0 + 1, in_size - 1)
    t = (src - i0).astype(np.float32)
    for o in range(out_size):
        R[o, i0[o]] += 1.0 - t[o]
        R[o, i1[o]] += t[o]
    return R


def _plain_matmul(Am_np, X):
    M, K = Am_np.shape
    Nc = X.shape[1]
    Mp = _round_up(M, 8)
    Kp = _round_up(K, 128)
    Np = _round_up(Nc, 128)
    A = jnp.pad(jnp.asarray(Am_np), ((0, Mp - M), (0, Kp - K))).astype(jnp.bfloat16)
    Wt = jnp.pad(X, ((0, Kp - K), (0, Np - Nc))).reshape(1, Kp, Np).astype(jnp.bfloat16)
    out = _fused_matmul(A, Wt, (0,), Mp)
    return out[:M, :Nc]


@jax.jit
def upsample_bilinear_2x(x):
    """Separable bilinear 2x (align_corners=True) as two small MXU matmuls."""
    N, H, Wd, C = x.shape
    OH, OW = 2 * H, 2 * Wd
    eye = np.eye(N, dtype=np.float32)
    Rh = np.kron(eye, _interp_matrix(H, OH))    # (N*OH, N*H)
    Rw = np.kron(eye, _interp_matrix(Wd, OW))   # (N*OW, N*W)
    # pass 1: interpolate H
    y = _plain_matmul(Rh, x.reshape(N * H, Wd * C))            # (N*OH, W*C)
    y = y.reshape(N, OH, Wd, C).transpose(0, 2, 1, 3)          # (N, W, OH, C)
    # pass 2: interpolate W
    z = _plain_matmul(Rw, y.reshape(N * Wd, OH * C))           # (N*OW, OH*C)
    z = z.reshape(N, OW, OH, C).transpose(0, 2, 1, 3)          # (N, OH, OW, C)
    return z


# ----------------------------- parameters (deterministic synthetic init) ---------------

class _PG:
    def __init__(self, key):
        self.key, self.n = key, 0

    def next(self):
        self.n += 1
        return jax.random.fold_in(self.key, self.n)


def _conv_bn(pg, kh, kw, cin, cout):
    # conv (bias=False) followed by eval-mode BatchNorm, folded into (w, b)
    std = float(np.sqrt(2.0 / (kh * kw * cin)))
    w = std * jax.random.normal(pg.next(), (kh, kw, cin, cout), jnp.float32)
    gamma = 1.0 + 0.1 * jax.random.normal(pg.next(), (cout,), jnp.float32)
    beta = 0.05 * jax.random.normal(pg.next(), (cout,), jnp.float32)
    mean = 0.01 * jax.random.normal(pg.next(), (cout,), jnp.float32)
    var = jnp.ones((cout,), jnp.float32)
    scale = gamma / jnp.sqrt(var + _BN_EPS)
    shift = beta - mean * scale
    return w * scale[None, None, None, :], shift


def _conv_bias(pg, kh, kw, cin, cout):
    std = float(np.sqrt(2.0 / (kh * kw * cin)))
    w = std * jax.random.normal(pg.next(), (kh, kw, cin, cout), jnp.float32)
    b = 0.05 * jax.random.normal(pg.next(), (cout,), jnp.float32)
    return w, b


def _bn(pg, c):
    gamma = 1.0 + 0.1 * jax.random.normal(pg.next(), (c,), jnp.float32)
    beta = 0.05 * jax.random.normal(pg.next(), (c,), jnp.float32)
    mean = 0.01 * jax.random.normal(pg.next(), (c,), jnp.float32)
    var = jnp.ones((c,), jnp.float32)
    scale = gamma / jnp.sqrt(var + _BN_EPS)
    shift = beta - mean * scale
    return scale, shift


def _bottleneck_params(pg, cin, planes, stride, downsample):
    p = {"c1": _conv_bn(pg, 1, 1, cin, planes),
         "c2": _conv_bn(pg, 3, 3, planes, planes),
         "c3": _conv_bn(pg, 1, 1, planes, 4 * planes),
         "stride": stride}
    if downsample:
        p["ds"] = _conv_bn(pg, 1, 1, cin, 4 * planes)
    return p


def _layer_params(pg, cin, planes, blocks, stride):
    layer = [_bottleneck_params(pg, cin, planes, stride, True)]
    for _ in range(blocks - 1):
        layer.append(_bottleneck_params(pg, 4 * planes, planes, 1, False))
    return layer


def make_fcn_params(key, num_classes=1):
    pg = _PG(key)
    return {
        "stem_conv": _conv_bn(pg, 7, 7, 3, 64),
        "layer1": _layer_params(pg, 64, 64, 3, 1),
        "layer2": _layer_params(pg, 256, 128, 4, 2),
        "layer3": _layer_params(pg, 512, 256, 6, 2),
        "layer4": _layer_params(pg, 1024, 512, 3, 2),
        "deconv1": _conv_bias(pg, 3, 3, 2048, 1024), "bn1": _bn(pg, 1024),
        "deconv2": _conv_bias(pg, 3, 3, 1024, 512), "bn2": _bn(pg, 512),
        "deconv3": _conv_bias(pg, 3, 3, 512, 128), "bn3": _bn(pg, 128),
        "deconv4": _conv_bias(pg, 3, 3, 128, 64), "bn4": _bn(pg, 64),
        "deconv5": _conv_bias(pg, 3, 3, 64, 32), "bn5": _bn(pg, 32),
        "classifier": _conv_bias(pg, 1, 1, 32, num_classes),
    }


# ----------------------------- forward pass -----------------------------

def _bottleneck_fwd(x, p):
    stride = p["stride"]
    out = conv1x1(x, *p["c1"], relu=True)
    if stride == 1:
        out = conv3x3_s1(out, *p["c2"], relu=True)
    else:
        out = conv_im2col(out, *p["c2"], stride=stride, padding=1, relu=True)
    if "ds" in p:
        xi = x if stride == 1 else x[:, ::stride, ::stride, :]
        identity = conv1x1(xi, *p["ds"])
    else:
        identity = x
    # relu(bn3(conv3) + identity), BN folded into (w, b): relu(acc + b + identity)
    return conv1x1(out, *p["c3"], relu=True, skip=identity, relu_before_skip=False)


def fcn_forward(x_nchw, params):
    x = jnp.transpose(x_nchw, (0, 2, 3, 1))  # NCHW -> NHWC
    # stem: conv7x7/2 + (folded) BN + ReLU fused, then 3x3/2 max-pool
    x = conv_im2col(x, *params["stem_conv"], stride=2, padding=3, relu=True)
    x = maxpool_3x3_s2_p1(x)
    for blk in params["layer1"]:
        x = _bottleneck_fwd(x, blk)
    for blk in params["layer2"]:
        x = _bottleneck_fwd(x, blk)
    x2 = x
    for blk in params["layer3"]:
        x = _bottleneck_fwd(x, blk)
    x3 = x
    for blk in params["layer4"]:
        x = _bottleneck_fwd(x, blk)
    x4 = x

    def deconv_stage(v, cp, bn, skip=None):
        u = upsample_bilinear_2x(v)
        # matches PyTorch: T = relu(conv(up(v))); T = bn(T + skip)
        return conv3x3_s1(u, cp[0], cp[1], relu=True, relu_before_skip=True,
                          skip=skip, bn=bn)

    T5 = deconv_stage(x4, params["deconv1"], params["bn1"], skip=x3)
    T4 = deconv_stage(T5, params["deconv2"], params["bn2"], skip=x2)
    T3 = deconv_stage(T4, params["deconv3"], params["bn3"])
    T2 = deconv_stage(T3, params["deconv4"], params["bn4"])
    T1 = deconv_stage(T2, params["deconv5"], params["bn5"])
    out = conv1x1(T1, *params["classifier"])
    return jnp.transpose(out, (0, 3, 1, 2))  # NHWC -> NCHW


if __name__ == "__main__":
    key = jax.random.PRNGKey(0)
    params = make_fcn_params(jax.random.fold_in(key, 1), num_classes=1)
    x = jax.random.normal(jax.random.fold_in(key, 2), (2, 3, 32, 32), jnp.float32)  # NCHW
    out = fcn_forward(x, params)
    out = jax.block_until_ready(out)
    assert out.shape == (2, 1, 32, 32), out.shape
    assert bool(jnp.all(jnp.isfinite(out)))
    print("KERNEL_OK")
</pallas_src>

<mosaic_0001>
module attributes {stable_mosaic.version = 11 : i64} {
  func.func @_conv_kernel(%arg0: i32, %arg1: i32, %arg2: memref<512x256xbf16, #tpu.memory_space<vmem>>, %arg3: memref<1x256x128xbf16, #tpu.memory_space<vmem>>, %arg4: memref<1x128xf32, #tpu.memory_space<vmem>>, %arg5: memref<512x128xf32, #tpu.memory_space<vmem>>, %arg6: memref<512x128xf32, #tpu.memory_space<vmem>>) attributes {dimension_semantics = [#tpu.dimension_semantics<parallel>, #tpu.dimension_semantics<arbitrary>], iteration_bounds = array<i64: 1, 1>, scalar_prefetch = 0 : i64, scratch_operands = 1 : i64, tpu.core_type = #tpu.core_type<tc>, window_params = [{pipeline_mode = #tpu.pipeline_mode<synchronous>, transform_indices = @transform_0, window_bounds = array<i64: 512, 256>}, {transform_indices = @transform_1, window_bounds = array<i64: 1, 256, 128>}, {transform_indices = @transform_2, window_bounds = array<i64: 1, 128>}, {transform_indices = @transform_3, window_bounds = array<i64: 512, 128>}]} {
    %c0_i32 = arith.constant 0 : i32
    %0 = arith.cmpi eq, %arg1, %c0_i32 : i32
    %1 = arith.extui %0 : i1 to i32
    %c0_i32_0 = arith.constant 0 : i32
    %2 = arith.cmpi ne, %1, %c0_i32_0 : i32
    scf.if %2 {
      %cst_10 = arith.constant 0.000000e+00 : f32
      %16 = vector.broadcast %cst_10 : f32 to vector<512x128xf32>
      %c0_11 = arith.constant 0 : index
      %c0_12 = arith.constant 0 : index
      %17 = vector.load %arg6[%c0_11, %c0_12] : memref<512x128xf32, #tpu.memory_space<vmem>>, vector<512x128xf32>
      tpu.vector_store %arg6[%c0_11, %c0_12], %16 {strides = array<i32>} : memref<512x128xf32, #tpu.memory_space<vmem>>, vector<512x128xf32>,
    } else {
    }
    %c256_i32 = arith.constant 256 : i32
    %3 = arith.muli %arg1, %c256_i32 : i32
    %4 = tpu.assume_multiple %3, 256 : i32
    %c0 = arith.constant 0 : index
    %5 = arith.index_cast %4 : i32 to index
    %6 = vector.load %arg2[%c0, %5] : memref<512x256xbf16, #tpu.memory_space<vmem>>, vector<512x256xbf16>
    %c0_1 = arith.constant 0 : index
    %c0_2 = arith.constant 0 : index
    %c0_3 = arith.constant 0 : index
    %7 = vector.load %arg3[%c0_1, %c0_2, %c0_3] : memref<1x256x128xbf16, #tpu.memory_space<vmem>>, vector<1x256x128xbf16>
    %8 = vector.shape_cast %7 : vector<1x256x128xbf16> to vector<256x128xbf16>
    %cst = arith.constant dense<0.000000e+00> : vector<512x128xf32>
    %9 = tpu.matmul %6, %8, %cst {dimension_numbers = #tpu.dot_dimension_numbers<[1], [0], [0], [1], [0, 0, 1, 1], [], []>} : vector<512x256xbf16>, vector<256x128xbf16>, vector<512x128xf32> -> vector<512x128xf32>
    %c0_4 = arith.constant 0 : index
    %c0_5 = arith.constant 0 : index
    %10 = vector.load %arg6[%c0_4, %c0_5] : memref<512x128xf32, #tpu.memory_space<vmem>>, vector<512x128xf32>
    %11 = arith.addf %10, %9 : vector<512x128xf32>
    %c0_6 = arith.constant 0 : index
    %c0_7 = arith.constant 0 : index
    %12 = vector.load %arg6[%c0_6, %c0_7] : memref<512x128xf32, #tpu.memory_space<vmem>>, vector<512x128xf32>
    tpu.vector_store %arg6[%c0_6, %c0_7], %11 {strides = array<i32>} : memref<512x128xf32, #tpu.memory_space<vmem>>, vector<512x128xf32>,
    %c0_i32_8 = arith.constant 0 : i32
    %13 = arith.cmpi eq, %arg1, %c0_i32_8 : i32
    %14 = arith.extui %13 : i1 to i32
    %c0_i32_9 = arith.constant 0 : i32
    %15 = arith.cmpi ne, %14, %c0_i32_9 : i32
    scf.if %15 {
      %c0_10 = arith.constant 0 : index
      %c0_11 = arith.constant 0 : index
      %16 = vector.load %arg6[%c0_10, %c0_11] : memref<512x128xf32, #tpu.memory_space<vmem>>, vector<512x128xf32>
      %c0_12 = arith.constant 0 : index
      %c0_13 = arith.constant 0 : index
      %17 = vector.load %arg4[%c0_12, %c0_13] : memref<1x128xf32, #tpu.memory_space<vmem>>, vector<1x128xf32>
      %18 = vector.broadcast %17 : vector<1x128xf32> to vector<512x128xf32>
      %19 = arith.addf %16, %18 : vector<512x128xf32>
      %cst_14 = arith.constant 0.000000e+00 : f32
      %20 = vector.broadcast %cst_14 : f32 to vector<512x128xf32>
      %21 = arith.maximumf %19, %20 : vector<512x128xf32>
      %c0_15 = arith.constant 0 : index
      %c0_16 = arith.constant 0 : index
      %22 = vector.load %arg5[%c0_15, %c0_16] : memref<512x128xf32, #tpu.memory_space<vmem>>, vector<512x128xf32>
      tpu.vector_store %arg5[%c0_15, %c0_16], %21 {strides = array<i32>} : memref<512x128xf32, #tpu.memory_space<vmem>>, vector<512x128xf32>,
    } else {
    }
    return
  }
  func.func @transform_0(%arg0: i32, %arg1: i32) -> (i32, i32) {
    %c0_i32 = arith.constant 0 : i32
    %c0_i32_0 = arith.constant 0 : i32
    %c0_i32_1 = arith.constant 0 : i32
    return %c0_i32, %c0_i32_0 : i32, i32
  }
  func.func @transform_1(%arg0: i32, %arg1: i32) -> (i32, i32, i32) {
    %c0_i32 = arith.constant 0 : i32
    %c0_i32_0 = arith.constant 0 : i32
    return %c0_i32, %arg1, %arg0 : i32, i32, i32
  }
  func.func @transform_2(%arg0: i32, %arg1: i32) -> (i32, i32) {
    %c0_i32 = arith.constant 0 : i32
    %c0_i32_0 = arith.constant 0 : i32
    return %c0_i32, %arg0 : i32, i32
  }
  func.func @transform_3(%arg0: i32, %arg1: i32) -> (i32, i32) {
    %c0_i32 = arith.constant 0 : i32
    %c0_i32_0 = arith.constant 0 : i32
    return %c0_i32, %arg0 : i32, i32
  }
}

</mosaic_0001>

<llo_original>
// kernel: conv_im2col.1
$region0: #{conv_im2col.1}
  #allocation0 [shape = 'u32[]', space=smem, size = 0x4, offset = 0x4, fixed_abs, tag = 'smem constant byte address 0x4 - core index']
  #allocation1 [shape = 'u32[144,128]{1,0:T(1,128)}', space=vmem, size = 0x12000, scoped, tag = 'internal scratch']
  #allocation2 [shape = 'f32[512,128]{1,0:T(8,128)}', space=vmem, size = 0x40000, scoped, tag = 'scratch operand']
  %s0 = inlined_call_operand.vmem [shape: bf16[512,256], index: 0, kind: input, shape index: {}]
  %s1 = inlined_call_operand.vmem [shape: bf16[1,256,128], index: 1, kind: input, shape index: {}]
  %s2 = inlined_call_operand.vmem [shape: f32[1,128], index: 2, kind: input, shape index: {}]
  %s3 = inlined_call_operand.hbm [shape: f32[512,128], index: 3, kind: output, shape index: {}]
  %s4 = sld [smem:[#allocation0]]
  $region30: #{conv_im2col.1} parent=0
    _
  %s6 = ssub.s32 1, %s4
  %s7 = scalar_select 0, %s6, %s4
  $region1: #{conv_im2col.1} parent=0
    #allocation3 [shape = 'u8[262144]{0}', space=vmem, size = 0x40000, scoped, tag = 'output window, operand 0, single buffered']
    #allocation4 [shape = 's32[1]{0}', space=sflag, size = 0x4, scoped, tag = 'scoped memory for conv_im2col.1']
    %8 = vsyncpa [#allocation4], 0
    // Predicated region
    $region2: #{conv_im2col.1} parent=1 // pred_check
      _
    $region3: #{conv_im2col.1} parent=1 // pred_check_branch
      %10 = sbr.rel (0) target = $region5
    $region4: #{conv_im2col.1} parent=1 // pred_region
      _
    $region5: #{conv_im2col.1} parent=1 // pred_fallthru
      _
    // Predicated region
    $region6: #{conv_im2col.1} parent=1 // pred_check
      _
    $region7: #{conv_im2col.1} parent=1 // pred_check_branch
      %12 = sbr.rel (0) target = $region9
    $region8: #{conv_im2col.1} parent=1 // pred_region
      _
    $region9: #{conv_im2col.1} parent=1 // pred_fallthru
      _
    // Predicated region
    $region10: #{conv_im2col.1} parent=1 // pred_check
      _
    $region11: #{conv_im2col.1} parent=1 // pred_check_branch
      %14 = sbr.rel (0) target = $region13
    $region12: #{conv_im2col.1} parent=1 // pred_region
      _
    $region13: #{conv_im2col.1} parent=1 // pred_fallthru
      _
    %p16 = scmp.eq.s32.totalorder 0, 0
    // Predicated region
    $region14: #{conv_im2col.1} parent=1 // pred_check
      %p17 = pneg %p16
    $region15: #{conv_im2col.1} parent=1 // pred_check_branch
      %19 = sbr.rel (%p17) target = $region17
    $region16: #{conv_im2col.1} parent=1 // pred_region
      %20 = vst [vmem:[#allocation2] sm:$0xff] 0.0
      %21 = vst [vmem:[#allocation2 + $0x8] sm:$0xff] 0.0
      %22 = vst [vmem:[#allocation2 + $0x10] sm:$0xff] 0.0
      %23 = vst [vmem:[#allocation2 + $0x18] sm:$0xff] 0.0
      %24 = vst [vmem:[#allocation2 + $0x20] sm:$0xff] 0.0
      %25 = vst [vmem:[#allocation2 + $0x28] sm:$0xff] 0.0
      %26 = vst [vmem:[#allocation2 + $0x30] sm:$0xff] 0.0
      %27 = vst [vmem:[#allocation2 + $0x38] sm:$0xff] 0.0
      %28 = vst [vmem:[#allocation2 + $0x40] sm:$0xff] 0.0
      %29 = vst [vmem:[#allocation2 + $0x48] sm:$0xff] 0.0
      %30 = vst [vmem:[#allocation2 + $0x50] sm:$0xff] 0.0
      %31 = vst [vmem:[#allocation2 + $0x58] sm:$0xff] 0.0
      %32 = vst [vmem:[#allocation2 + $0x60] sm:$0xff] 0.0
      %33 = vst [vmem:[#allocation2 + $0x68] sm:$0xff] 0.0
      %34 = vst [vmem:[#allocation2 + $0x70] sm:$0xff] 0.0
      %35 = vst [vmem:[#allocation2 + $0x78] sm:$0xff] 0.0
      %36 = vst [vmem:[#allocation2 + $0x80] sm:$0xff] 0.0
      %37 = vst [vmem:[#allocation2 + $0x88] sm:$0xff] 0.0
      %38 = vst [vmem:[#allocation2 + $0x90] sm:$0xff] 0.0
      %39 = vst [vmem:[#allocation2 + $0x98] sm:$0xff] 0.0
      %40 = vst [vmem:[#allocation2 + $0xa0] sm:$0xff] 0.0
      %41 = vst [vmem:[#allocation2 + $0xa8] sm:$0xff] 0.0
      %42 = vst [vmem:[#allocation2 + $0xb0] sm:$0xff] 0.0
      %43 = vst [vmem:[#allocation2 + $0xb8] sm:$0xff] 0.0
      %44 = vst [vmem:[#allocation2 + $0xc0] sm:$0xff] 0.0
      %45 = vst [vmem:[#allocation2 + $0xc8] sm:$0xff] 0.0
      %46 = vst [vmem:[#allocation2 + $0xd0] sm:$0xff] 0.0
      %47 = vst [vmem:[#allocation2 + $0xd8] sm:$0xff] 0.0
      %48 = vst [vmem:[#allocation2 + $0xe0] sm:$0xff] 0.0
      %49 = vst [vmem:[#allocation2 + $0xe8] sm:$0xff] 0.0
      %50 = vst [vmem:[#allocation2 + $0xf0] sm:$0xff] 0.0
      %51 = vst [vmem:[#allocation2 + $0xf8] sm:$0xff] 0.0
      %52 = vst [vmem:[#allocation2 + $0x100] sm:$0xff] 0.0
      %53 = vst [vmem:[#allocation2 + $0x108] sm:$0xff] 0.0
      %54 = vst [vmem:[#allocation2 + $0x110] sm:$0xff] 0.0
      %55 = vst [vmem:[#allocation2 + $0x118] sm:$0xff] 0.0
      %56 = vst [vmem:[#allocation2 + $0x120] sm:$0xff] 0.0
      %57 = vst [vmem:[#allocation2 + $0x128] sm:$0xff] 0.0
      %58 = vst [vmem:[#allocation2 + $0x130] sm:$0xff] 0.0
      %59 = vst [vmem:[#allocation2 + $0x138] sm:$0xff] 0.0
      %60 = vst [vmem:[#allocation2 + $0x140] sm:$0xff] 0.0
      %61 = vst [vmem:[#allocation2 + $0x148] sm:$0xff] 0.0
      %62 = vst [vmem:[#allocation2 + $0x150] sm:$0xff] 0.0
      %63 = vst [vmem:[#allocation2 + $0x158] sm:$0xff] 0.0
      %64 = vst [vmem:[#allocation2 + $0x160] sm:$0xff] 0.0
      %65 = vst [vmem:[#allocation2 + $0x168] sm:$0xff] 0.0
      %66 = vst [vmem:[#allocation2 + $0x170] sm:$0xff] 0.0
      %67 = vst [vmem:[#allocation2 + $0x178] sm:$0xff] 0.0
      %68 = vst [vmem:[#allocation2 + $0x180] sm:$0xff] 0.0
      %69 = vst [vmem:[#allocation2 + $0x188] sm:$0xff] 0.0
      %70 = vst [vmem:[#allocation2 + $0x190] sm:$0xff] 0.0
      %71 = vst [vmem:[#allocation2 + $0x198] sm:$0xff] 0.0
      %72 = vst [vmem:[#allocation2 + $0x1a0] sm:$0xff] 0.0
      %73 = vst [vmem:[#allocation2 + $0x1a8] sm:$0xff] 0.0
      %74 = vst [vmem:[#allocation2 + $0x1b0] sm:$0xff] 0.0
      %75 = vst [vmem:[#allocation2 + $0x1b8] sm:$0xff] 0.0
      %76 = vst [vmem:[#allocation2 + $0x1c0] sm:$0xff] 0.0
      %77 = vst [vmem:[#allocation2 + $0x1c8] sm:$0xff] 0.0
      %78 = vst [vmem:[#allocation2 + $0x1d0] sm:$0xff] 0.0
      %79 = vst [vmem:[#allocation2 + $0x1d8] sm:$0xff] 0.0
      %80 = vst [vmem:[#allocation2 + $0x1e0] sm:$0xff] 0.0
      %81 = vst [vmem:[#allocation2 + $0x1e8] sm:$0xff] 0.0
      %82 = vst [vmem:[#allocation2 + $0x1f0] sm:$0xff] 0.0
      %83 = vst [vmem:[#allocation2 + $0x1f8] sm:$0xff] 0.0
    $region17: #{conv_im2col.1} parent=1 // pred_fallthru
      _
    %s84 = smul.u32 0, 256
    %s85 = sshra.s32 %s84, 7
    %s86 = sand.u32 %s84, 127
    %s87 = smul.addr %s85, 4
    %s88 = scalar_lea.vmem %s0, %s87
    %v89 = vld [vmem:[%s88] sm:$0xff]
    %v90 = vld [vmem:[%s88 + $0x8] sm:$0xff]
    %v91 = vld [vmem:[%s88 + $0x10] sm:$0xff]
    %v92 = vld [vmem:[%s88 + $0x18] sm:$0xff]
    %v93 = vld [vmem:[%s88 + $0x20] sm:$0xff]
    %v94 = vld [vmem:[%s88 + $0x28] sm:$0xff]
    %v95 = vld [vmem:[%s88 + $0x30] sm:$0xff]
    %v96 = vld [vmem:[%s88 + $0x38] sm:$0xff]
    %v97 = vld [vmem:[%s88 + $0x40] sm:$0xff]
    %v98 = vld [vmem:[%s88 + $0x48] sm:$0xff]
    %v99 = vld [vmem:[%s88 + $0x50] sm:$0xff]
    %v100 = vld [vmem:[%s88 + $0x58] sm:$0xff]
    %v101 = vld [vmem:[%s88 + $0x60] sm:$0xff]
    %v102 = vld [vmem:[%s88 + $0x68] sm:$0xff]
    %v103 = vld [vmem:[%s88 + $0x70] sm:$0xff]
    %v104 = vld [vmem:[%s88 + $0x78] sm:$0xff]
    %v105 = vld [vmem:[%s88 + $0x80] sm:$0xff]
    %v106 = vld [vmem:[%s88 + $0x88] sm:$0xff]
    %v107 = vld [vmem:[%s88 + $0x90] sm:$0xff]
    %v108 = vld [vmem:[%s88 + $0x98] sm:$0xff]
    %v109 = vld [vmem:[%s88 + $0xa0] sm:$0xff]
    %v110 = vld [vmem:[%s88 + $0xa8] sm:$0xff]
    %v111 = vld [vmem:[%s88 + $0xb0] sm:$0xff]
    %v112 = vld [vmem:[%s88 + $0xb8] sm:$0xff]
    %v113 = vld [vmem:[%s88 + $0xc0] sm:$0xff]
    %v114 = vld [vmem:[%s88 + $0xc8] sm:$0xff]
    %v115 = vld [vmem:[%s88 + $0xd0] sm:$0xff]
    %v116 = vld [vmem:[%s88 + $0xd8] sm:$0xff]
    %v117 = vld [vmem:[%s88 + $0xe0] sm:$0xff]
    %v118 = vld [vmem:[%s88 + $0xe8] sm:$0xff]
    %v119 = vld [vmem:[%s88 + $0xf0] sm:$0xff]
    %v120 = vld [vmem:[%s88 + $0xf8] sm:$0xff]
    %v121 = vld [vmem:[%s88 + $0x100] sm:$0xff]
    %v122 = vld [vmem:[%s88 + $0x108] sm:$0xff]
    %v123 = vld [vmem:[%s88 + $0x110] sm:$0xff]
    %v124 = vld [vmem:[%s88 + $0x118] sm:$0xff]
    %v125 = vld [vmem:[%s88 + $0x120] sm:$0xff]
    %v126 = vld [vmem:[%s88 + $0x128] sm:$0xff]
    %v127 = vld [vmem:[%s88 + $0x130] sm:$0xff]
    %v128 = vld [vmem:[%s88 + $0x138] sm:$0xff]
    %v129 = vld [vmem:[%s88 + $0x140] sm:$0xff]
    %v130 = vld [vmem:[%s88 + $0x148] sm:$0xff]
    %v131 = vld [vmem:[%s88 + $0x150] sm:$0xff]
    %v132 = vld [vmem:[%s88 + $0x158] sm:$0xff]
    %v133 = vld [vmem:[%s88 + $0x160] sm:$0xff]
    %v134 = vld [vmem:[%s88 + $0x168] sm:$0xff]
    %v135 = vld [vmem:[%s88 + $0x170] sm:$0xff]
    %v136 = vld [vmem:[%s88 + $0x178] sm:$0xff]
    %v137 = vld [vmem:[%s88 + $0x180] sm:$0xff]
    %v138 = vld [vmem:[%s88 + $0x188] sm:$0xff]
    %v139 = vld [vmem:[%s88 + $0x190] sm:$0xff]
    %v140 = vld [vmem:[%s88 + $0x198] sm:$0xff]
    %v141 = vld [vmem:[%s88 + $0x1a0] sm:$0xff]
    %v142 = vld [vmem:[%s88 + $0x1a8] sm:$0xff]
    %v143 = vld [vmem:[%s88 + $0x1b0] sm:$0xff]
    %v144 = vld [vmem:[%s88 + $0x1b8] sm:$0xff]
    %v145 = vld [vmem:[%s88 + $0x1c0] sm:$0xff]
    %v146 = vld [vmem:[%s88 + $0x1c8] sm:$0xff]
    %v147 = vld [vmem:[%s88 + $0x1d0] sm:$0xff]
    %v148 = vld [vmem:[%s88 + $0x1d8] sm:$0xff]
    %v149 = vld [vmem:[%s88 + $0x1e0] sm:$0xff]
    %v150 = vld [vmem:[%s88 + $0x1e8] sm:$0xff]
    %v151 = vld [vmem:[%s88 + $0x1f0] sm:$0xff]
    %v152 = vld [vmem:[%s88 + $0x1f8] sm:$0xff]
    %v153 = vld [vmem:[%s1] sm:$0xf]
    %v154 = vld [vmem:[%s1 + $0x4] sm:$0xf]
    %v155 = vld [vmem:[%s1 + $0x8] sm:$0xf]
    %v156 = vld [vmem:[%s1 + $0xc] sm:$0xf]
    %v157 = vld [vmem:[%s1 + $0x10] sm:$0xf]
    %v158 = vld [vmem:[%s1 + $0x14] sm:$0xf]
    %v159 = vld [vmem:[%s1 + $0x18] sm:$0xf]
    %v160 = vld [vmem:[%s1 + $0x1c] sm:$0xf]
    %v161 = vld [vmem:[%s1 + $0x20] sm:$0xf]
    %v162 = vld [vmem:[%s1 + $0x24] sm:$0xf]
    %v163 = vld [vmem:[%s1 + $0x28] sm:$0xf]
    %v164 = vld [vmem:[%s1 + $0x2c] sm:$0xf]
    %v165 = vld [vmem:[%s1 + $0x30] sm:$0xf]
    %v166 = vld [vmem:[%s1 + $0x34] sm:$0xf]
    %v167 = vld [vmem:[%s1 + $0x38] sm:$0xf]
    %v168 = vld [vmem:[%s1 + $0x3c] sm:$0xf]
    %v169 = vld [vmem:[%s1 + $0x40] sm:$0xf]
    %v170 = vld [vmem:[%s1 + $0x44] sm:$0xf]
    %v171 = vld [vmem:[%s1 + $0x48] sm:$0xf]
    %v172 = vld [vmem:[%s1 + $0x4c] sm:$0xf]
    %v173 = vld [vmem:[%s1 + $0x50] sm:$0xf]
    %v174 = vld [vmem:[%s1 + $0x54] sm:$0xf]
    %v175 = vld [vmem:[%s1 + $0x58] sm:$0xf]
    %v176 = vld [vmem:[%s1 + $0x5c] sm:$0xf]
    %v177 = vld [vmem:[%s1 + $0x60] sm:$0xf]
    %v178 = vld [vmem:[%s1 + $0x64] sm:$0xf]
    %v179 = vld [vmem:[%s1 + $0x68] sm:$0xf]
    %v180 = vld [vmem:[%s1 + $0x6c] sm:$0xf]
    %v181 = vld [vmem:[%s1 + $0x70] sm:$0xf]
    %v182 = vld [vmem:[%s1 + $0x74] sm:$0xf]
    %v183 = vld [vmem:[%s1 + $0x78] sm:$0xf]
    %v184 = vld [vmem:[%s1 + $0x7c] sm:$0xf]
    %v249 = vunpack.c.l.b16 %v89
    %v250 = vunpack.c.h.b16 %v89
    %v251 = vunpack.c.l.b16 %v90
    %v252 = vunpack.c.h.b16 %v90
    %v253 = vunpack.c.l.b16 %v91
    %v254 = vunpack.c.h.b16 %v91
    %v255 = vunpack.c.l.b16 %v92
    %v256 = vunpack.c.h.b16 %v92
    %v257 = vunpack.c.l.b16 %v93
    %v258 = vunpack.c.h.b16 %v93
    %v259 = vunpack.c.l.b16 %v94
    %v260 = vunpack.c.h.b16 %v94
    %v261 = vunpack.c.l.b16 %v95
    %v262 = vunpack.c.h.b16 %v95
    %v263 = vunpack.c.l.b16 %v96
    %v264 = vunpack.c.h.b16 %v96
    %v265 = vunpack.c.l.b16 %v97
    %v266 = vunpack.c.h.b16 %v97
    %v267 = vunpack.c.l.b16 %v98
    %v268 = vunpack.c.h.b16 %v98
    %v269 = vunpack.c.l.b16 %v99
    %v270 = vunpack.c.h.b16 %v99
    %v271 = vunpack.c.l.b16 %v100
    %v272 = vunpack.c.h.b16 %v100
    %v273 = vunpack.c.l.b16 %v101
    %v274 = vunpack.c.h.b16 %v101
    %v275 = vunpack.c.l.b16 %v102
    %v276 = vunpack.c.h.b16 %v102
    %v277 = vunpack.c.l.b16 %v103
    %v278 = vunpack.c.h.b16 %v103
    %v279 = vunpack.c.l.b16 %v104
    %v280 = vunpack.c.h.b16 %v104
    %v281 = vunpack.c.l.b16 %v105
    %v282 = vunpack.c.h.b16 %v105
    %v283 = vunpack.c.l.b16 %v106
    %v284 = vunpack.c.h.b16 %v106
    %v285 = vunpack.c.l.b16 %v107
    %v286 = vunpack.c.h.b16 %v107
    %v287 = vunpack.c.l.b16 %v108
    %v288 = vunpack.c.h.b16 %v108
    %v289 = vunpack.c.l.b16 %v109
    %v290 = vunpack.c.h.b16 %v109
    %v291 = vunpack.c.l.b16 %v110
    %v292 = vunpack.c.h.b16 %v110
    %v293 = vunpack.c.l.b16 %v111
    %v294 = vunpack.c.h.b16 %v111
    %v295 = vunpack.c.l.b16 %v112
    %v296 = vunpack.c.h.b16 %v112
    %v297 = vunpack.c.l.b16 %v113
    %v298 = vunpack.c.h.b16 %v113
    %v299 = vunpack.c.l.b16 %v114
    %v300 = vunpack.c.h.b16 %v114
    %v301 = vunpack.c.l.b16 %v115
    %v302 = vunpack.c.h.b16 %v115
    %v303 = vunpack.c.l.b16 %v116
    %v304 = vunpack.c.h.b16 %v116
    %v305 = vunpack.c.l.b16 %v117
    %v306 = vunpack.c.h.b16 %v117
    %v307 = vunpack.c.l.b16 %v118
    %v308 = vunpack.c.h.b16 %v118
    %v309 = vunpack.c.l.b16 %v119
    %v310 = vunpack.c.h.b16 %v119
    %v311 = vunpack.c.l.b16 %v120
    %v312 = vunpack.c.h.b16 %v120
    %v313 = vunpack.c.l.b16 %v121
    %v314 = vunpack.c.h.b16 %v121
    %v315 = vunpack.c.l.b16 %v122
    %v316 = vunpack.c.h.b16 %v122
    %v317 = vunpack.c.l.b16 %v123
    %v318 = vunpack.c.h.b16 %v123
    %v319 = vunpack.c.l.b16 %v124
    %v320 = vunpack.c.h.b16 %v124
    %v321 = vunpack.c.l.b16 %v125
    %v322 = vunpack.c.h.b16 %v125
    %v323 = vunpack.c.l.b16 %v126
    %v324 = vunpack.c.h.b16 %v126
    %v325 = vunpack.c.l.b16 %v127
    %v326 = vunpack.c.h.b16 %v127
    %v327 = vunpack.c.l.b16 %v128
    %v328 = vunpack.c.h.b16 %v128
    %v329 = vunpack.c.l.b16 %v129
    %v330 = vunpack.c.h.b16 %v129
    %v331 = vunpack.c.l.b16 %v130
    %v332 = vunpack.c.h.b16 %v130
    %v333 = vunpack.c.l.b16 %v131
    %v334 = vunpack.c.h.b16 %v131
    %v335 = vunpack.c.l.b16 %v132
    %v336 = vunpack.c.h.b16 %v132
    %v337 = vunpack.c.l.b16 %v133
    %v338 = vunpack.c.h.b16 %v133
    %v339 = vunpack.c.l.b16 %v134
    %v340 = vunpack.c.h.b16 %v134
    %v341 = vunpack.c.l.b16 %v135
    %v342 = vunpack.c.h.b16 %v135
    %v343 = vunpack.c.l.b16 %v136
    %v344 = vunpack.c.h.b16 %v136
    %v345 = vunpack.c.l.b16 %v137
    %v346 = vunpack.c.h.b16 %v137
    %v347 = vunpack.c.l.b16 %v138
    %v348 = vunpack.c.h.b16 %v138
    %v349 = vunpack.c.l.b16 %v139
    %v350 = vunpack.c.h.b16 %v139
    %v351 = vunpack.c.l.b16 %v140
    %v352 = vunpack.c.h.b16 %v140
    %v353 = vunpack.c.l.b16 %v141
    %v354 = vunpack.c.h.b16 %v141
    %v355 = vunpack.c.l.b16 %v142
    %v356 = vunpack.c.h.b16 %v142
    %v357 = vunpack.c.l.b16 %v143
    %v358 = vunpack.c.h.b16 %v143
    %v359 = vunpack.c.l.b16 %v144
    %v360 = vunpack.c.h.b16 %v144
    %v361 = vunpack.c.l.b16 %v145
    %v362 = vunpack.c.h.b16 %v145
    %v363 = vunpack.c.l.b16 %v146
    %v364 = vunpack.c.h.b16 %v146
    %v365 = vunpack.c.l.b16 %v147
    %v366 = vunpack.c.h.b16 %v147
    %v367 = vunpack.c.l.b16 %v148
    %v368 = vunpack.c.h.b16 %v148
    %v369 = vunpack.c.l.b16 %v149
    %v370 = vunpack.c.h.b16 %v149
    %v371 = vunpack.c.l.b16 %v150
    %v372 = vunpack.c.h.b16 %v150
    %v373 = vunpack.c.l.b16 %v151
    %v374 = vunpack.c.h.b16 %v151
    %v375 = vunpack.c.l.b16 %v152
    %v376 = vunpack.c.h.b16 %v152
    %v377 = vpack.c.b16 %v251, %v249
    %v378 = vpack.c.b16 %v252, %v250
    %v379 = vpack.c.b16 %v255, %v253
    %v380 = vpack.c.b16 %v256, %v254
    %v381 = vpack.c.b16 %v259, %v257
    %v382 = vpack.c.b16 %v260, %v258
    %v383 = vpack.c.b16 %v263, %v261
    %v384 = vpack.c.b16 %v264, %v262
    %v385 = vpack.c.b16 %v267, %v265
    %v386 = vpack.c.b16 %v268, %v266
    %v387 = vpack.c.b16 %v271, %v269
    %v388 = vpack.c.b16 %v272, %v270
    %v389 = vpack.c.b16 %v275, %v273
    %v390 = vpack.c.b16 %v276, %v274
    %v391 = vpack.c.b16 %v279, %v277
    %v392 = vpack.c.b16 %v280, %v278
    %v393 = vpack.c.b16 %v283, %v281
    %v394 = vpack.c.b16 %v284, %v282
    %v395 = vpack.c.b16 %v287, %v285
    %v396 = vpack.c.b16 %v288, %v286
    %v397 = vpack.c.b16 %v291, %v289
    %v398 = vpack.c.b16 %v292, %v290
    %v399 = vpack.c.b16 %v295, %v293
    %v400 = vpack.c.b16 %v296, %v294
    %v401 = vpack.c.b16 %v299, %v297
    %v402 = vpack.c.b16 %v300, %v298
    %v403 = vpack.c.b16 %v303, %v301
    %v404 = vpack.c.b16 %v304, %v302
    %v405 = vpack.c.b16 %v307, %v305
    %v406 = vpack.c.b16 %v308, %v306
    %v407 = vpack.c.b16 %v311, %v309
    %v408 = vpack.c.b16 %v312, %v310
    %v409 = vpack.c.b16 %v315, %v313
    %v410 = vpack.c.b16 %v316, %v314
    %v411 = vpack.c.b16 %v319, %v317
    %v412 = vpack.c.b16 %v320, %v318
    %v413 = vpack.c.b16 %v323, %v321
    %v414 = vpack.c.b16 %v324, %v322
    %v415 = vpack.c.b16 %v327, %v325
    %v416 = vpack.c.b16 %v328, %v326
    %v417 = vpack.c.b16 %v331, %v329
    %v418 = vpack.c.b16 %v332, %v330
    %v419 = vpack.c.b16 %v335, %v333
    %v420 = vpack.c.b16 %v336, %v334
    %v421 = vpack.c.b16 %v339, %v337
    %v422 = vpack.c.b16 %v340, %v338
    %v423 = vpack.c.b16 %v343, %v341
    %v424 = vpack.c.b16 %v344, %v342
    %v425 = vpack.c.b16 %v347, %v345
    %v426 = vpack.c.b16 %v348, %v346
    %v427 = vpack.c.b16 %v351, %v349
    %v428 = vpack.c.b16 %v352, %v350
    %v429 = vpack.c.b16 %v355, %v353
    %v430 = vpack.c.b16 %v356, %v354
    %v431 = vpack.c.b16 %v359, %v357
    %v432 = vpack.c.b16 %v360, %v358
    %v433 = vpack.c.b16 %v363, %v361
    %v434 = vpack.c.b16 %v364, %v362
    %v435 = vpack.c.b16 %v367, %v365
    %v436 = vpack.c.b16 %v368, %v366
    %v437 = vpack.c.b16 %v371, %v369
    %v438 = vpack.c.b16 %v372, %v370
    %v439 = vpack.c.b16 %v375, %v373
    %v440 = vpack.c.b16 %v376, %v374
    %v537 = vunpack.c.l.b16 %v153
    %v538 = vunpack.c.l.b16 %v154
    %v539 = vunpack.c.l.b16 %v155
    %v540 = vunpack.c.l.b16 %v156
    %v541 = vunpack.c.l.b16 %v157
    %v542 = vunpack.c.l.b16 %v158
    %v543 = vunpack.c.l.b16 %v159
    %v544 = vunpack.c.l.b16 %v160
    %v545 = vunpack.c.l.b16 %v161
    %v546 = vunpack.c.l.b16 %v162
    %v547 = vunpack.c.l.b16 %v163
    %v548 = vunpack.c.l.b16 %v164
    %v549 = vunpack.c.l.b16 %v165
    %v550 = vunpack.c.l.b16 %v166
    %v551 = vunpack.c.l.b16 %v167
    %v552 = vunpack.c.l.b16 %v168
    %v553 = vunpack.c.l.b16 %v169
    %v554 = vunpack.c.l.b16 %v170
    %v555 = vunpack.c.l.b16 %v171
    %v556 = vunpack.c.l.b16 %v172
    %v557 = vunpack.c.l.b16 %v173
    %v558 = vunpack.c.l.b16 %v174
    %v559 = vunpack.c.l.b16 %v175
    %v560 = vunpack.c.l.b16 %v176
    %v561 = vunpack.c.l.b16 %v177
    %v562 = vunpack.c.l.b16 %v178
    %v563 = vunpack.c.l.b16 %v179
    %v564 = vunpack.c.l.b16 %v180
    %v565 = vunpack.c.l.b16 %v181
    %v566 = vunpack.c.l.b16 %v182
    %v567 = vunpack.c.l.b16 %v183
    %v568 = vunpack.c.l.b16 %v184
    %v569 = vpack.c.b16 %v538, %v537
    %v570 = vpack.c.b16 %v540, %v539
    %v571 = vpack.c.b16 %v542, %v541
    %v572 = vpack.c.b16 %v544, %v543
    %v573 = vpack.c.b16 %v546, %v545
    %v574 = vpack.c.b16 %v548, %v547
    %v575 = vpack.c.b16 %v550, %v549
    %v576 = vpack.c.b16 %v552, %v551
    %v577 = vpack.c.b16 %v554, %v553
    %v578 = vpack.c.b16 %v556, %v555
    %v579 = vpack.c.b16 %v558, %v557
    %v580 = vpack.c.b16 %v560, %v559
    %v581 = vpack.c.b16 %v562, %v561
    %v582 = vpack.c.b16 %v564, %v563
    %v583 = vpack.c.b16 %v566, %v565
    %v584 = vpack.c.b16 %v568, %v567
    %601 = vmatprep.subr.bf16.mxu0 0
    %602 = vmatpush1.bf16.msra.mxu0 %v569
    %603 = vmatprep.subr.bf16.mxu0 0
    %604 = vmatpush1.bf16.msra.mxu0 %v570
    %605 = vmatprep.subr.bf16.mxu0 0
    %606 = vmatpush1.bf16.msra.mxu0 %v571
    %607 = vmatprep.subr.bf16.mxu0 0
    %608 = vmatpush1.bf16.msra.mxu0 %v572
    %609 = vmatprep.subr.bf16.mxu0 0
    %610 = vmatpush1.bf16.msra.mxu0 %v573
    %611 = vmatprep.subr.bf16.mxu0 0
    %612 = vmatpush1.bf16.msra.mxu0 %v574
    %613 = vmatprep.subr.bf16.mxu0 0
    %614 = vmatpush1.bf16.msra.mxu0 %v575
    %615 = vmatprep.subr.bf16.mxu0 0
    %616 = vmatpush1.bf16.msra.mxu0 %v576
    %617 = vmatprep.subr.bf16.mxu0 0
    %618 = vmatpush1.bf16.msra.mxu0 %v577
    %619 = vmatprep.subr.bf16.mxu0 0
    %620 = vmatpush1.bf16.msra.mxu0 %v578
    %621 = vmatprep.subr.bf16.mxu0 0
    %622 = vmatpush1.bf16.msra.mxu0 %v579
    %623 = vmatprep.subr.bf16.mxu0 0
    %624 = vmatpush1.bf16.msra.mxu0 %v580
    %625 = vmatprep.subr.bf16.mxu0 0
    %626 = vmatpush1.bf16.msra.mxu0 %v581
    %627 = vmatprep.subr.bf16.mxu0 0
    %628 = vmatpush1.bf16.msra.mxu0 %v582
    %629 = vmatprep.subr.bf16.mxu0 0
    %630 = vmatpush1.bf16.msra.mxu0 %v583
    %631 = vmatprep.subr.bf16.mxu0 0
    %632 = vmatpush1.bf16.msra.mxu0 %v584
    %633 = vmatprep.mubr.bf16.mxu0 %v378
    %634 = vmatmul.mubr.bf16.gmra.mrb[0].mxu0 %v377
    %v635 = vpop.f32.mrb[0].mxu0
    %v636 = vadd.f32 0.0, %v635
    %v637 = vpop.f32.mrb[0].mxu0
    %v638 = vpop.f32.mrb[0].mxu0
    %v639 = vadd.f32 0.0, %v638
    %v640 = vpop.f32.mrb[0].mxu0
    %641 = vmatprep.mubr.bf16.mxu0 %v380
    %642 = vmatmul.mubr.bf16.gmra.mrb[0].mxu0 %v379
    %v643 = vpop.f32.mrb[0].mxu0
    %v644 = vadd.f32 0.0, %v643
    %v645 = vpop.f32.mrb[0].mxu0
    %v646 = vpop.f32.mrb[0].mxu0
    %v647 = vadd.f32 0.0, %v646
    %v648 = vpop.f32.mrb[0].mxu0
    %649 = vmatprep.mubr.bf16.mxu0 %v382
    %650 = vmatmul.mubr.bf16.gmra.mrb[0].mxu0 %v381
    %v651 = vpop.f32.mrb[0].mxu0
    %v652 = vadd.f32 0.0, %v651
    %v653 = vpop.f32.mrb[0].mxu0
    %v654 = vpop.f32.mrb[0].mxu0
    %v655 = vadd.f32 0.0, %v654
    %v656 = vpop.f32.mrb[0].mxu0
    %657 = vmatprep.mubr.bf16.mxu0 %v384
    %658 = vmatmul.mubr.bf16.gmra.mrb[0].mxu0 %v383
    %v659 = vpop.f32.mrb[0].mxu0
    %v660 = vadd.f32 0.0, %v659
    %v661 = vpop.f32.mrb[0].mxu0
    %v662 = vpop.f32.mrb[0].mxu0
    %v663 = vadd.f32 0.0, %v662
    %v664 = vpop.f32.mrb[0].mxu0
    %665 = vmatprep.mubr.bf16.mxu0 %v386
    %666 = vmatmul.mubr.bf16.gmra.mrb[0].mxu0 %v385
    %v667 = vpop.f32.mrb[0].mxu0
    %v668 = vadd.f32 0.0, %v667
    %v669 = vpop.f32.mrb[0].mxu0
    %v670 = vpop.f32.mrb[0].mxu0
    %v671 = vadd.f32 0.0, %v670
    %v672 = vpop.f32.mrb[0].mxu0
    %673 = vmatprep.mubr.bf16.mxu0 %v388
    %674 = vmatmul.mubr.bf16.gmra.mrb[0].mxu0 %v387
    %v675 = vpop.f32.mrb[0].mxu0
    %v676 = vadd.f32 0.0, %v675
    %v677 = vpop.f32.mrb[0].mxu0
    %v678 = vpop.f32.mrb[0].mxu0
    %v679 = vadd.f32 0.0, %v678
    %v680 = vpop.f32.mrb[0].mxu0
    %681 = vmatprep.mubr.bf16.mxu0 %v390
    %682 = vmatmul.mubr.bf16.gmra.mrb[0].mxu0 %v389
    %v683 = vpop.f32.mrb[0].mxu0
    %v684 = vadd.f32 0.0, %v683
    %v685 = vpop.f32.mrb[0].mxu0
    %v686 = vpop.f32.mrb[0].mxu0
    %v687 = vadd.f32 0.0, %v686
    %v688 = vpop.f32.mrb[0].mxu0
    %689 = vmatprep.mubr.bf16.mxu0 %v392
    %690 = vmatmul.mubr.bf16.gmra.mrb[0].mxu0 %v391
    %v691 = vpop.f32.mrb[0].mxu0
    %v692 = vadd.f32 0.0, %v691
    %v693 = vpop.f32.mrb[0].mxu0
    %v694 = vpop.f32.mrb[0].mxu0
    %v695 = vadd.f32 0.0, %v694
    %v696 = vpop.f32.mrb[0].mxu0
    %697 = vmatprep.mubr.bf16.mxu0 %v394
    %698 = vmatmul.mubr.bf16.gmra.mrb[0].mxu0 %v393
    %v699 = vpop.f32.mrb[0].mxu0
    %v700 = vadd.f32 0.0, %v699
    %v701 = vpop.f32.mrb[0].mxu0
    %v702 = vpop.f32.mrb[0].mxu0
    %v703 = vadd.f32 0.0, %v702
    %v704 = vpop.f32.mrb[0].mxu0
    %705 = vmatprep.mubr.bf16.mxu0 %v396
    %706 = vmatmul.mubr.bf16.gmra.mrb[0].mxu0 %v395
    %v707 = vpop.f32.mrb[0].mxu0
    %v708 = vadd.f32 0.0, %v707
    %v709 = vpop.f32.mrb[0].mxu0
    %v710 = vpop.f32.mrb[0].mxu0
    %v711 = vadd.f32 0.0, %v710
    %v712 = vpop.f32.mrb[0].mxu0
    %713 = vmatprep.mubr.bf16.mxu0 %v398
    %714 = vmatmul.mubr.bf16.gmra.mrb[0].mxu0 %v397
    %v715 = vpop.f32.mrb[0].mxu0
    %v716 = vadd.f32 0.0, %v715
    %v717 = vpop.f32.mrb[0].mxu0
    %v718 = vpop.f32.mrb[0].mxu0
    %v719 = vadd.f32 0.0, %v718
    %v720 = vpop.f32.mrb[0].mxu0
    %721 = vmatprep.mubr.bf16.mxu0 %v400
    %722 = vmatmul.mubr.bf16.gmra.mrb[0].mxu0 %v399
    %v723 = vpop.f32.mrb[0].mxu0
    %v724 = vadd.f32 0.0, %v723
    %v725 = vpop.f32.mrb[0].mxu0
    %v726 = vpop.f32.mrb[0].mxu0
    %v727 = vadd.f32 0.0, %v726
    %v728 = vpop.f32.mrb[0].mxu0
    %729 = vmatprep.mubr.bf16.mxu0 %v402
    %730 = vmatmul.mubr.bf16.gmra.mrb[0].mxu0 %v401
    %v731 = vpop.f32.mrb[0].mxu0
    %v732 = vadd.f32 0.0, %v731
    %v733 = vpop.f32.mrb[0].mxu0
    %v734 = vpop.f32.mrb[0].mxu0
    %v735 = vadd.f32 0.0, %v734
    %v736 = vpop.f32.mrb[0].mxu0
    %737 = vmatprep.mubr.bf16.mxu0 %v404
    %738 = vmatmul.mubr.bf16.gmra.mrb[0].mxu0 %v403
    %v739 = vpop.f32.mrb[0].mxu0
    %v740 = vadd.f32 0.0, %v739
    %v741 = vpop.f32.mrb[0].mxu0
    %v742 = vpop.f32.mrb[0].mxu0
    %v743 = vadd.f32 0.0, %v742
    %v744 = vpop.f32.mrb[0].mxu0
    %745 = vmatprep.mubr.bf16.mxu0 %v406
    %746 = vmatmul.mubr.bf16.gmra.mrb[0].mxu0 %v405
    %v747 = vpop.f32.mrb[0].mxu0
    %v748 = vadd.f32 0.0, %v747
    %v749 = vpop.f32.mrb[0].mxu0
    %v750 = vpop.f32.mrb[0].mxu0
    %v751 = vadd.f32 0.0, %v750
    %v752 = vpop.f32.mrb[0].mxu0
    %753 = vmatprep.mubr.bf16.mxu0 %v408
    %754 = vmatmul.mubr.bf16.gmra.mrb[0].mxu0 %v407
    %v755 = vpop.f32.mrb[0].mxu0
    %v756 = vadd.f32 0.0, %v755
    %v757 = vpop.f32.mrb[0].mxu0
    %v758 = vpop.f32.mrb[0].mxu0
    %v759 = vadd.f32 0.0, %v758
    %v760 = vpop.f32.mrb[0].mxu0
    %761 = vmatprep.mubr.bf16.mxu0 %v410
    %762 = vmatmul.mubr.bf16.gmra.mrb[0].mxu0 %v409
    %v763 = vpop.f32.mrb[0].mxu0
    %v764 = vadd.f32 0.0, %v763
    %v765 = vpop.f32.mrb[0].mxu0
    %v766 = vpop.f32.mrb[0].mxu0
    %v767 = vadd.f32 0.0, %v766
    %v768 = vpop.f32.mrb[0].mxu0
    %769 = vmatprep.mubr.bf16.mxu0 %v412
    %770 = vmatmul.mubr.bf16.gmra.mrb[0].mxu0 %v411
    %v771 = vpop.f32.mrb[0].mxu0
    %v772 = vadd.f32 0.0, %v771
    %v773 = vpop.f32.mrb[0].mxu0
    %v774 = vpop.f32.mrb[0].mxu0
    %v775 = vadd.f32 0.0, %v774
    %v776 = vpop.f32.mrb[0].mxu0
    %777 = vmatprep.mubr.bf16.mxu0 %v414
    %778 = vmatmul.mubr.bf16.gmra.mrb[0].mxu0 %v413
    %v779 = vpop.f32.mrb[0].mxu0
    %v780 = vadd.f32 0.0, %v779
    %v781 = vpop.f32.mrb[0].mxu0
    %v782 = vpop.f32.mrb[0].mxu0
    %v783 = vadd.f32 0.0, %v782
    %v784 = vpop.f32.mrb[0].mxu0
    %785 = vmatprep.mubr.bf16.mxu0 %v416
    %786 = vmatmul.mubr.bf16.gmra.mrb[0].mxu0 %v415
    %v787 = vpop.f32.mrb[0].mxu0
    %v788 = vadd.f32 0.0, %v787
    %v789 = vpop.f32.mrb[0].mxu0
    %v790 = vpop.f32.mrb[0].mxu0
    %v791 = vadd.f32 0.0, %v790
    %v792 = vpop.f32.mrb[0].mxu0
    %793 = vmatprep.mubr.bf16.mxu0 %v418
    %794 = vmatmul.mubr.bf16.gmra.mrb[0].mxu0 %v417
    %v795 = vpop.f32.mrb[0].mxu0
    %v796 = vadd.f32 0.0, %v795
    %v797 = vpop.f32.mrb[0].mxu0
    %v798 = vpop.f32.mrb[0].mxu0
    %v799 = vadd.f32 0.0, %v798
    %v800 = vpop.f32.mrb[0].mxu0
    %801 = vmatprep.mubr.bf16.mxu0 %v420
    %802 = vmatmul.mubr.bf16.gmra.mrb[0].mxu0 %v419
    %v803 = vpop.f32.mrb[0].mxu0
    %v804 = vadd.f32 0.0, %v803
    %v805 = vpop.f32.mrb[0].mxu0
    %v806 = vpop.f32.mrb[0].mxu0
    %v807 = vadd.f32 0.0, %v806
    %v808 = vpop.f32.mrb[0].mxu0
    %809 = vmatprep.mubr.bf16.mxu0 %v422
    %810 = vmatmul.mubr.bf16.gmra.mrb[0].mxu0 %v421
    %v811 = vpop.f32.mrb[0].mxu0
    %v812 = vadd.f32 0.0, %v811
    %v813 = vpop.f32.mrb[0].mxu0
    %v814 = vpop.f32.mrb[0].mxu0
    %v815 = vadd.f32 0.0, %v814
    %v816 = vpop.f32.mrb[0].mxu0
    %817 = vmatprep.mubr.bf16.mxu0 %v424
    %818 = vmatmul.mubr.bf16.gmra.mrb[0].mxu0 %v423
    %v819 = vpop.f32.mrb[0].mxu0
    %v820 = vadd.f32 0.0, %v819
    %v821 = vpop.f32.mrb[0].mxu0
    %v822 = vpop.f32.mrb[0].mxu0
    %v823 = vadd.f32 0.0, %v822
    %v824 = vpop.f32.mrb[0].mxu0
    %825 = vmatprep.mubr.bf16.mxu0 %v426
    %826 = vmatmul.mubr.bf16.gmra.mrb[0].mxu0 %v425
    %v827 = vpop.f32.mrb[0].mxu0
    %v828 = vadd.f32 0.0, %v827
    %v829 = vpop.f32.mrb[0].mxu0
    %v830 = vpop.f32.mrb[0].mxu0
    %v831 = vadd.f32 0.0, %v830
    %v832 = vpop.f32.mrb[0].mxu0
    %833 = vmatprep.mubr.bf16.mxu0 %v428
    %834 = vmatmul.mubr.bf16.gmra.mrb[0].mxu0 %v427
    %v835 = vpop.f32.mrb[0].mxu0
    %v836 = vadd.f32 0.0, %v835
    %v837 = vpop.f32.mrb[0].mxu0
    %v838 = vpop.f32.mrb[0].mxu0
    %v839 = vadd.f32 0.0, %v838
    %v840 = vpop.f32.mrb[0].mxu0
    %841 = vmatprep.mubr.bf16.mxu0 %v430
    %842 = vmatmul.mubr.bf16.gmra.mrb[0].mxu0 %v429
    %v843 = vpop.f32.mrb[0].mxu0
    %v844 = vadd.f32 0.0, %v843
    %v845 = vpop.f32.mrb[0].mxu0
    %v846 = vpop.f32.mrb[0].mxu0
    %v847 = vadd.f32 0.0, %v846
    %v848 = vpop.f32.mrb[0].mxu0
    %849 = vmatprep.mubr.bf16.mxu0 %v432
    %850 = vmatmul.mubr.bf16.gmra.mrb[0].mxu0 %v431
    %v851 = vpop.f32.mrb[0].mxu0
    %v852 = vadd.f32 0.0, %v851
    %v853 = vpop.f32.mrb[0].mxu0
    %v854 = vpop.f32.mrb[0].mxu0
    %v855 = vadd.f32 0.0, %v854
    %v856 = vpop.f32.mrb[0].mxu0
    %857 = vmatprep.mubr.bf16.mxu0 %v434
    %858 = vmatmul.mubr.bf16.gmra.mrb[0].mxu0 %v433
    %v859 = vpop.f32.mrb[0].mxu0
    %v860 = vadd.f32 0.0, %v859
    %v861 = vpop.f32.mrb[0].mxu0
    %v862 = vpop.f32.mrb[0].mxu0
    %v863 = vadd.f32 0.0, %v862
    %v864 = vpop.f32.mrb[0].mxu0
    %865 = vmatprep.mubr.bf16.mxu0 %v436
    %866 = vmatmul.mubr.bf16.gmra.mrb[0].mxu0 %v435
    %v867 = vpop.f32.mrb[0].mxu0
    %v868 = vadd.f32 0.0, %v867
    %v869 = vpop.f32.mrb[0].mxu0
    %v870 = vpop.f32.mrb[0].mxu0
    %v871 = vadd.f32 0.0, %v870
    %v872 = vpop.f32.mrb[0].mxu0
    %873 = vmatprep.mubr.bf16.mxu0 %v438
    %874 = vmatmul.mubr.bf16.gmra.mrb[0].mxu0 %v437
    %v875 = vpop.f32.mrb[0].mxu0
    %v876 = vadd.f32 0.0, %v875
    %v877 = vpop.f32.mrb[0].mxu0
    %v878 = vpop.f32.mrb[0].mxu0
    %v879 = vadd.f32 0.0, %v878
    %v880 = vpop.f32.mrb[0].mxu0
    %881 = vmatprep.mubr.bf16.mxu0 %v440
    %882 = vmatmul.mubr.bf16.gmra.mrb[0].mxu0 %v439
    %v883 = vpop.f32.mrb[0].mxu0
    %v884 = vadd.f32 0.0, %v883
    %v885 = vpop.f32.mrb[0].mxu0
    %v886 = vpop.f32.mrb[0].mxu0
    %v887 = vadd.f32 0.0, %v886
    %v888 = vpop.f32.mrb[0].mxu0
    %889 = vdwg.mxu0
    %v890 = vld [vmem:[#allocation2] sm:$0xff]
    %v891 = vld [vmem:[#allocation2 + $0x8] sm:$0xff]
    %v892 = vld [vmem:[#allocation2 + $0x10] sm:$0xff]
    %v893 = vld [vmem:[#allocation2 + $0x18] sm:$0xff]
    %v894 = vld [vmem:[#allocation2 + $0x20] sm:$0xff]
    %v895 = vld [vmem:[#allocation2 + $0x28] sm:$0xff]
    %v896 = vld [vmem:[#allocation2 + $0x30] sm:$0xff]
    %v897 = vld [vmem:[#allocation2 + $0x38] sm:$0xff]
    %v898 = vld [vmem:[#allocation2 + $0x40] sm:$0xff]
    %v899 = vld [vmem:[#allocation2 + $0x48] sm:$0xff]
    %v900 = vld [vmem:[#allocation2 + $0x50] sm:$0xff]
    %v901 = vld [vmem:[#allocation2 + $0x58] sm:$0xff]
    %v902 = vld [vmem:[#allocation2 + $0x60] sm:$0xff]
    %v903 = vld [vmem:[#allocation2 + $0x68] sm:$0xff]
    %v904 = vld [vmem:[#allocation2 + $0x70] sm:$0xff]
    %v905 = vld [vmem:[#allocation2 + $0x78] sm:$0xff]
    %v906 = vld [vmem:[#allocation2 + $0x80] sm:$0xff]
    %v907 = vld [vmem:[#allocation2 + $0x88] sm:$0xff]
    %v908 = vld [vmem:[#allocation2 + $0x90] sm:$0xff]
    %v909 = vld [vmem:[#allocation2 + $0x98] sm:$0xff]
    %v910 = vld [vmem:[#allocation2 + $0xa0] sm:$0xff]
    %v911 = vld [vmem:[#allocation2 + $0xa8] sm:$0xff]
    %v912 = vld [vmem:[#allocation2 + $0xb0] sm:$0xff]
    %v913 = vld [vmem:[#allocation2 + $0xb8] sm:$0xff]
    %v914 = vld [vmem:[#allocation2 + $0xc0] sm:$0xff]
    %v915 = vld [vmem:[#allocation2 + $0xc8] sm:$0xff]
    %v916 = vld [vmem:[#allocation2 + $0xd0] sm:$0xff]
    %v917 = vld [vmem:[#allocation2 + $0xd8] sm:$0xff]
    %v918 = vld [vmem:[#allocation2 + $0xe0] sm:$0xff]
    %v919 = vld [vmem:[#allocation2 + $0xe8] sm:$0xff]
    %v920 = vld [vmem:[#allocation2 + $0xf0] sm:$0xff]
    %v921 = vld [vmem:[#allocation2 + $0xf8] sm:$0xff]
    %v922 = vld [vmem:[#allocation2 + $0x100] sm:$0xff]
    %v923 = vld [vmem:[#allocation2 + $0x108] sm:$0xff]
    %v924 = vld [vmem:[#allocation2 + $0x110] sm:$0xff]
    %v925 = vld [vmem:[#allocation2 + $0x118] sm:$0xff]
    %v926 = vld [vmem:[#allocation2 + $0x120] sm:$0xff]
    %v927 = vld [vmem:[#allocation2 + $0x128] sm:$0xff]
    %v928 = vld [vmem:[#allocation2 + $0x130] sm:$0xff]
    %v929 = vld [vmem:[#allocation2 + $0x138] sm:$0xff]
    %v930 = vld [vmem:[#allocation2 + $0x140] sm:$0xff]
    %v931 = vld [vmem:[#allocation2 + $0x148] sm:$0xff]
    %v932 = vld [vmem:[#allocation2 + $0x150] sm:$0xff]
    %v933 = vld [vmem:[#allocation2 + $0x158] sm:$0xff]
    %v934 = vld [vmem:[#allocation2 + $0x160] sm:$0xff]
    %v935 = vld [vmem:[#allocation2 + $0x168] sm:$0xff]
    %v936 = vld [vmem:[#allocation2 + $0x170] sm:$0xff]
    %v937 = vld [vmem:[#allocation2 + $0x178] sm:$0xff]
    %v938 = vld [vmem:[#allocation2 + $0x180] sm:$0xff]
    %v939 = vld [vmem:[#allocation2 + $0x188] sm:$0xff]
    %v940 = vld [vmem:[#allocation2 + $0x190] sm:$0xff]
    %v941 = vld [vmem:[#allocation2 + $0x198] sm:$0xff]
    %v942 = vld [vmem:[#allocation2 + $0x1a0] sm:$0xff]
    %v943 = vld [vmem:[#allocation2 + $0x1a8] sm:$0xff]
    %v944 = vld [vmem:[#allocation2 + $0x1b0] sm:$0xff]
    %v945 = vld [vmem:[#allocation2 + $0x1b8] sm:$0xff]
    %v946 = vld [vmem:[#allocation2 + $0x1c0] sm:$0xff]
    %v947 = vld [vmem:[#allocation2 + $0x1c8] sm:$0xff]
    %v948 = vld [vmem:[#allocation2 + $0x1d0] sm:$0xff]
    %v949 = vld [vmem:[#allocation2 + $0x1d8] sm:$0xff]
    %v950 = vld [vmem:[#allocation2 + $0x1e0] sm:$0xff]
    %v951 = vld [vmem:[#allocation2 + $0x1e8] sm:$0xff]
    %v952 = vld [vmem:[#allocation2 + $0x1f0] sm:$0xff]
    %v953 = vld [vmem:[#allocation2 + $0x1f8] sm:$0xff]
    %v954 = vadd.f32 %v890, %v636
    %v955 = vadd.f32 %v891, %v639
    %v956 = vadd.f32 %v892, %v644
    %v957 = vadd.f32 %v893, %v647
    %v958 = vadd.f32 %v894, %v652
    %v959 = vadd.f32 %v895, %v655
    %v960 = vadd.f32 %v896, %v660
    %v961 = vadd.f32 %v897, %v663
    %v962 = vadd.f32 %v898, %v668
    %v963 = vadd.f32 %v899, %v671
    %v964 = vadd.f32 %v900, %v676
    %v965 = vadd.f32 %v901, %v679
    %v966 = vadd.f32 %v902, %v684
    %v967 = vadd.f32 %v903, %v687
    %v968 = vadd.f32 %v904, %v692
    %v969 = vadd.f32 %v905, %v695
    %v970 = vadd.f32 %v906, %v700
    %v971 = vadd.f32 %v907, %v703
    %v972 = vadd.f32 %v908, %v708
    %v973 = vadd.f32 %v909, %v711
    %v974 = vadd.f32 %v910, %v716
    %v975 = vadd.f32 %v911, %v719
    %v976 = vadd.f32 %v912, %v724
    %v977 = vadd.f32 %v913, %v727
    %v978 = vadd.f32 %v914, %v732
    %v979 = vadd.f32 %v915, %v735
    %v980 = vadd.f32 %v916, %v740
    %v981 = vadd.f32 %v917, %v743
    %v982 = vadd.f32 %v918, %v748
    %v983 = vadd.f32 %v919, %v751
    %v984 = vadd.f32 %v920, %v756
    %v985 = vadd.f32 %v921, %v759
    %v986 = vadd.f32 %v922, %v764
    %v987 = vadd.f32 %v923, %v767
    %v988 = vadd.f32 %v924, %v772
    %v989 = vadd.f32 %v925, %v775
    %v990 = vadd.f32 %v926, %v780
    %v991 = vadd.f32 %v927, %v783
    %v992 = vadd.f32 %v928, %v788
    %v993 = vadd.f32 %v929, %v791
    %v994 = vadd.f32 %v930, %v796
    %v995 = vadd.f32 %v931, %v799
    %v996 = vadd.f32 %v932, %v804
    %v997 = vadd.f32 %v933, %v807
    %v998 = vadd.f32 %v934, %v812
    %v999 = vadd.f32 %v935, %v815
    %v1000 = vadd.f32 %v936, %v820
    %v1001 = vadd.f32 %v937, %v823
    %v1002 = vadd.f32 %v938, %v828
    %v1003 = vadd.f32 %v939, %v831
    %v1004 = vadd.f32 %v940, %v836
    %v1005 = vadd.f32 %v941, %v839
    %v1006 = vadd.f32 %v942, %v844
    %v1007 = vadd.f32 %v943, %v847
    %v1008 = vadd.f32 %v944, %v852
    %v1009 = vadd.f32 %v945, %v855
    %v1010 = vadd.f32 %v946, %v860
    %v1011 = vadd.f32 %v947, %v863
    %v1012 = vadd.f32 %v948, %v868
    %v1013 = vadd.f32 %v949, %v871
    %v1014 = vadd.f32 %v950, %v876
    %v1015 = vadd.f32 %v951, %v879
    %v1016 = vadd.f32 %v952, %v884
    %v1017 = vadd.f32 %v953, %v887
    %1018 = vst [vmem:[#allocation2] sm:$0xff] %v954
    %1019 = vst [vmem:[#allocation2 + $0x8] sm:$0xff] %v955
    %1020 = vst [vmem:[#allocation2 + $0x10] sm:$0xff] %v956
    %1021 = vst [vmem:[#allocation2 + $0x18] sm:$0xff] %v957
    %1022 = vst [vmem:[#allocation2 + $0x20] sm:$0xff] %v958
    %1023 = vst [vmem:[#allocation2 + $0x28] sm:$0xff] %v959
    %1024 = vst [vmem:[#allocation2 + $0x30] sm:$0xff] %v960
    %1025 = vst [vmem:[#allocation2 + $0x38] sm:$0xff] %v961
    %1026 = vst [vmem:[#allocation2 + $0x40] sm:$0xff] %v962
    %1027 = vst [vmem:[#allocation2 + $0x48] sm:$0xff] %v963
    %1028 = vst [vmem:[#allocation2 + $0x50] sm:$0xff] %v964
    %1029 = vst [vmem:[#allocation2 + $0x58] sm:$0xff] %v965
    %1030 = vst [vmem:[#allocation2 + $0x60] sm:$0xff] %v966
    %1031 = vst [vmem:[#allocation2 + $0x68] sm:$0xff] %v967
    %1032 = vst [vmem:[#allocation2 + $0x70] sm:$0xff] %v968
    %1033 = vst [vmem:[#allocation2 + $0x78] sm:$0xff] %v969
    %1034 = vst [vmem:[#allocation2 + $0x80] sm:$0xff] %v970
    %1035 = vst [vmem:[#allocation2 + $0x88] sm:$0xff] %v971
    %1036 = vst [vmem:[#allocation2 + $0x90] sm:$0xff] %v972
    %1037 = vst [vmem:[#allocation2 + $0x98] sm:$0xff] %v973
    %1038 = vst [vmem:[#allocation2 + $0xa0] sm:$0xff] %v974
    %1039 = vst [vmem:[#allocation2 + $0xa8] sm:$0xff] %v975
    %1040 = vst [vmem:[#allocation2 + $0xb0] sm:$0xff] %v976
    %1041 = vst [vmem:[#allocation2 + $0xb8] sm:$0xff] %v977
    %1042 = vst [vmem:[#allocation2 + $0xc0] sm:$0xff] %v978
    %1043 = vst [vmem:[#allocation2 + $0xc8] sm:$0xff] %v979
    %1044 = vst [vmem:[#allocation2 + $0xd0] sm:$0xff] %v980
    %1045 = vst [vmem:[#allocation2 + $0xd8] sm:$0xff] %v981
    %1046 = vst [vmem:[#allocation2 + $0xe0] sm:$0xff] %v982
    %1047 = vst [vmem:[#allocation2 + $0xe8] sm:$0xff] %v983
    %1048 = vst [vmem:[#allocation2 + $0xf0] sm:$0xff] %v984
    %1049 = vst [vmem:[#allocation2 + $0xf8] sm:$0xff] %v985
    %1050 = vst [vmem:[#allocation2 + $0x100] sm:$0xff] %v986
    %1051 = vst [vmem:[#allocation2 + $0x108] sm:$0xff] %v987
    %1052 = vst [vmem:[#allocation2 + $0x110] sm:$0xff] %v988
    %1053 = vst [vmem:[#allocation2 + $0x118] sm:$0xff] %v989
    %1054 = vst [vmem:[#allocation2 + $0x120] sm:$0xff] %v990
    %1055 = vst [vmem:[#allocation2 + $0x128] sm:$0xff] %v991
    %1056 = vst [vmem:[#allocation2 + $0x130] sm:$0xff] %v992
    %1057 = vst [vmem:[#allocation2 + $0x138] sm:$0xff] %v993
    %1058 = vst [vmem:[#allocation2 + $0x140] sm:$0xff] %v994
    %1059 = vst [vmem:[#allocation2 + $0x148] sm:$0xff] %v995
    %1060 = vst [vmem:[#allocation2 + $0x150] sm:$0xff] %v996
    %1061 = vst [vmem:[#allocation2 + $0x158] sm:$0xff] %v997
    %1062 = vst [vmem:[#allocation2 + $0x160] sm:$0xff] %v998
    %1063 = vst [vmem:[#allocation2 + $0x168] sm:$0xff] %v999
    %1064 = vst [vmem:[#allocation2 + $0x170] sm:$0xff] %v1000
    %1065 = vst [vmem:[#allocation2 + $0x178] sm:$0xff] %v1001
    %1066 = vst [vmem:[#allocation2 + $0x180] sm:$0xff] %v1002
    %1067 = vst [vmem:[#allocation2 + $0x188] sm:$0xff] %v1003
    %1068 = vst [vmem:[#allocation2 + $0x190] sm:$0xff] %v1004
    %1069 = vst [vmem:[#allocation2 + $0x198] sm:$0xff] %v1005
    %1070 = vst [vmem:[#allocation2 + $0x1a0] sm:$0xff] %v1006
    %1071 = vst [vmem:[#allocation2 + $0x1a8] sm:$0xff] %v1007
    %1072 = vst [vmem:[#allocation2 + $0x1b0] sm:$0xff] %v1008
    %1073 = vst [vmem:[#allocation2 + $0x1b8] sm:$0xff] %v1009
    %1074 = vst [vmem:[#allocation2 + $0x1c0] sm:$0xff] %v1010
    %1075 = vst [vmem:[#allocation2 + $0x1c8] sm:$0xff] %v1011
    %1076 = vst [vmem:[#allocation2 + $0x1d0] sm:$0xff] %v1012
    %1077 = vst [vmem:[#allocation2 + $0x1d8] sm:$0xff] %v1013
    %1078 = vst [vmem:[#allocation2 + $0x1e0] sm:$0xff] %v1014
    %1079 = vst [vmem:[#allocation2 + $0x1e8] sm:$0xff] %v1015
    %1080 = vst [vmem:[#allocation2 + $0x1f0] sm:$0xff] %v1016
    %1081 = vst [vmem:[#allocation2 + $0x1f8] sm:$0xff] %v1017
    // Predicated region
    $region18: #{conv_im2col.1} parent=1 // pred_check
      %p1082 = pneg %p16
    $region19: #{conv_im2col.1} parent=1 // pred_check_branch
      %1084 = sbr.rel (%p1082) target = $region21
    $region20: #{conv_im2col.1} parent=1 // pred_region
      %v1085 = vld [vmem:[#allocation2] sm:$0xff]
      %v1086 = vld [vmem:[#allocation2 + $0x8] sm:$0xff]
      %v1087 = vld [vmem:[#allocation2 + $0x10] sm:$0xff]
      %v1088 = vld [vmem:[#allocation2 + $0x18] sm:$0xff]
      %v1089 = vld [vmem:[#allocation2 + $0x20] sm:$0xff]
      %v1090 = vld [vmem:[#allocation2 + $0x28] sm:$0xff]
      %v1091 = vld [vmem:[#allocation2 + $0x30] sm:$0xff]
      %v1092 = vld [vmem:[#allocation2 + $0x38] sm:$0xff]
      %v1093 = vld [vmem:[#allocation2 + $0x40] sm:$0xff]
      %v1094 = vld [vmem:[#allocation2 + $0x48] sm:$0xff]
      %v1095 = vld [vmem:[#allocation2 + $0x50] sm:$0xff]
      %v1096 = vld [vmem:[#allocation2 + $0x58] sm:$0xff]
      %v1097 = vld [vmem:[#allocation2 + $0x60] sm:$0xff]
      %v1098 = vld [vmem:[#allocation2 + $0x68] sm:$0xff]
      %v1099 = vld [vmem:[#allocation2 + $0x70] sm:$0xff]
      %v1100 = vld [vmem:[#allocation2 + $0x78] sm:$0xff]
      %v1101 = vld [vmem:[#allocation2 + $0x80] sm:$0xff]
      %v1102 = vld [vmem:[#allocation2 + $0x88] sm:$0xff]
      %v1103 = vld [vmem:[#allocation2 + $0x90] sm:$0xff]
      %v1104 = vld [vmem:[#allocation2 + $0x98] sm:$0xff]
      %v1105 = vld [vmem:[#allocation2 + $0xa0] sm:$0xff]
      %v1106 = vld [vmem:[#allocation2 + $0xa8] sm:$0xff]
      %v1107 = vld [vmem:[#allocation2 + $0xb0] sm:$0xff]
      %v1108 = vld [vmem:[#allocation2 + $0xb8] sm:$0xff]
      %v1109 = vld [vmem:[#allocation2 + $0xc0] sm:$0xff]
      %v1110 = vld [vmem:[#allocation2 + $0xc8] sm:$0xff]
      %v1111 = vld [vmem:[#allocation2 + $0xd0] sm:$0xff]
      %v1112 = vld [vmem:[#allocation2 + $0xd8] sm:$0xff]
      %v1113 = vld [vmem:[#allocation2 + $0xe0] sm:$0xff]
      %v1114 = vld [vmem:[#allocation2 + $0xe8] sm:$0xff]
      %v1115 = vld [vmem:[#allocation2 + $0xf0] sm:$0xff]
      %v1116 = vld [vmem:[#allocation2 + $0xf8] sm:$0xff]
      %v1117 = vld [vmem:[#allocation2 + $0x100] sm:$0xff]
      %v1118 = vld [vmem:[#allocation2 + $0x108] sm:$0xff]
      %v1119 = vld [vmem:[#allocation2 + $0x110] sm:$0xff]
      %v1120 = vld [vmem:[#allocation2 + $0x118] sm:$0xff]
      %v1121 = vld [vmem:[#allocation2 + $0x120] sm:$0xff]
      %v1122 = vld [vmem:[#allocation2 + $0x128] sm:$0xff]
      %v1123 = vld [vmem:[#allocation2 + $0x130] sm:$0xff]
      %v1124 = vld [vmem:[#allocation2 + $0x138] sm:$0xff]
      %v1125 = vld [vmem:[#allocation2 + $0x140] sm:$0xff]
      %v1126 = vld [vmem:[#allocation2 + $0x148] sm:$0xff]
      %v1127 = vld [vmem:[#allocation2 + $0x150] sm:$0xff]
      %v1128 = vld [vmem:[#allocation2 + $0x158] sm:$0xff]
      %v1129 = vld [vmem:[#allocation2 + $0x160] sm:$0xff]
      %v1130 = vld [vmem:[#allocation2 + $0x168] sm:$0xff]
      %v1131 = vld [vmem:[#allocation2 + $0x170] sm:$0xff]
      %v1132 = vld [vmem:[#allocation2 + $0x178] sm:$0xff]
      %v1133 = vld [vmem:[#allocation2 + $0x180] sm:$0xff]
      %v1134 = vld [vmem:[#allocation2 + $0x188] sm:$0xff]
      %v1135 = vld [vmem:[#allocation2 + $0x190] sm:$0xff]
      %v1136 = vld [vmem:[#allocation2 + $0x198] sm:$0xff]
      %v1137 = vld [vmem:[#allocation2 + $0x1a0] sm:$0xff]
      %v1138 = vld [vmem:[#allocation2 + $0x1a8] sm:$0xff]
      %v1139 = vld [vmem:[#allocation2 + $0x1b0] sm:$0xff]
      %v1140 = vld [vmem:[#allocation2 + $0x1b8] sm:$0xff]
      %v1141 = vld [vmem:[#allocation2 + $0x1c0] sm:$0xff]
      %v1142 = vld [vmem:[#allocation2 + $0x1c8] sm:$0xff]
      %v1143 = vld [vmem:[#allocation2 + $0x1d0] sm:$0xff]
      %v1144 = vld [vmem:[#allocation2 + $0x1d8] sm:$0xff]
      %v1145 = vld [vmem:[#allocation2 + $0x1e0] sm:$0xff]
      %v1146 = vld [vmem:[#allocation2 + $0x1e8] sm:$0xff]
      %v1147 = vld [vmem:[#allocation2 + $0x1f0] sm:$0xff]
      %v1148 = vld [vmem:[#allocation2 + $0x1f8] sm:$0xff]
      %v1149 = vld [vmem:[%s2] sm:$0x1]
      %v1151 = vlaneseq
      %v1152 = vshrl.u32 %v1151, 7
      %v1153 = vsub.s32 0, %v1152
      %v1154 = vrot.slane %v1149, %v1153
      %v1156 = vadd.f32 %v1085, %v1154
      %v1157 = vadd.f32 %v1086, %v1154
      %v1158 = vadd.f32 %v1087, %v1154
      %v1159 = vadd.f32 %v1088, %v1154
      %v1160 = vadd.f32 %v1089, %v1154
      %v1161 = vadd.f32 %v1090, %v1154
      %v1162 = vadd.f32 %v1091, %v1154
      %v1163 = vadd.f32 %v1092, %v1154
      %v1164 = vadd.f32 %v1093, %v1154
      %v1165 = vadd.f32 %v1094, %v1154
      %v1166 = vadd.f32 %v1095, %v1154
      %v1167 = vadd.f32 %v1096, %v1154
      %v1168 = vadd.f32 %v1097, %v1154
      %v1169 = vadd.f32 %v1098, %v1154
      %v1170 = vadd.f32 %v1099, %v1154
      %v1171 = vadd.f32 %v1100, %v1154
      %v1172 = vadd.f32 %v1101, %v1154
      %v1173 = vadd.f32 %v1102, %v1154
      %v1174 = vadd.f32 %v1103, %v1154
      %v1175 = vadd.f32 %v1104, %v1154
      %v1176 = vadd.f32 %v1105, %v1154
      %v1177 = vadd.f32 %v1106, %v1154
      %v1178 = vadd.f32 %v1107, %v1154
      %v1179 = vadd.f32 %v1108, %v1154
      %v1180 = vadd.f32 %v1109, %v1154
      %v1181 = vadd.f32 %v1110, %v1154
      %v1182 = vadd.f32 %v1111, %v1154
      %v1183 = vadd.f32 %v1112, %v1154
      %v1184 = vadd.f32 %v1113, %v1154
      %v1185 = vadd.f32 %v1114, %v1154
      %v1186 = vadd.f32 %v1115, %v1154
      %v1187 = vadd.f32 %v1116, %v1154
      %v1188 = vadd.f32 %v1117, %v1154
      %v1189 = vadd.f32 %v1118, %v1154
      %v1190 = vadd.f32 %v1119, %v1154
      %v1191 = vadd.f32 %v1120, %v1154
      %v1192 = vadd.f32 %v1121, %v1154
      %v1193 = vadd.f32 %v1122, %v1154
      %v1194 = vadd.f32 %v1123, %v1154
      %v1195 = vadd.f32 %v1124, %v1154
      %v1196 = vadd.f32 %v1125, %v1154
      %v1197 = vadd.f32 %v1126, %v1154
      %v1198 = vadd.f32 %v1127, %v1154
      %v1199 = vadd.f32 %v1128, %v1154
      %v1200 = vadd.f32 %v1129, %v1154
      %v1201 = vadd.f32 %v1130, %v1154
      %v1202 = vadd.f32 %v1131, %v1154
      %v1203 = vadd.f32 %v1132, %v1154
      %v1204 = vadd.f32 %v1133, %v1154
      %v1205 = vadd.f32 %v1134, %v1154
      %v1206 = vadd.f32 %v1135, %v1154
      %v1207 = vadd.f32 %v1136, %v1154
      %v1208 = vadd.f32 %v1137, %v1154
      %v1209 = vadd.f32 %v1138, %v1154
      %v1210 = vadd.f32 %v1139, %v1154
      %v1211 = vadd.f32 %v1140, %v1154
      %v1212 = vadd.f32 %v1141, %v1154
      %v1213 = vadd.f32 %v1142, %v1154
      %v1214 = vadd.f32 %v1143, %v1154
      %v1215 = vadd.f32 %v1144, %v1154
      %v1216 = vadd.f32 %v1145, %v1154
      %v1217 = vadd.f32 %v1146, %v1154
      %v1218 = vadd.f32 %v1147, %v1154
      %v1219 = vadd.f32 %v1148, %v1154
      %v1220 = vmax.f32 %v1156, 0.0
      %v1221 = vmax.f32 %v1157, 0.0
      %v1222 = vmax.f32 %v1158, 0.0
      %v1223 = vmax.f32 %v1159, 0.0
      %v1224 = vmax.f32 %v1160, 0.0
      %v1225 = vmax.f32 %v1161, 0.0
      %v1226 = vmax.f32 %v1162, 0.0
      %v1227 = vmax.f32 %v1163, 0.0
      %v1228 = vmax.f32 %v1164, 0.0
      %v1229 = vmax.f32 %v1165, 0.0
      %v1230 = vmax.f32 %v1166, 0.0
      %v1231 = vmax.f32 %v1167, 0.0
      %v1232 = vmax.f32 %v1168, 0.0
      %v1233 = vmax.f32 %v1169, 0.0
      %v1234 = vmax.f32 %v1170, 0.0
      %v1235 = vmax.f32 %v1171, 0.0
      %v1236 = vmax.f32 %v1172, 0.0
      %v1237 = vmax.f32 %v1173, 0.0
      %v1238 = vmax.f32 %v1174, 0.0
      %v1239 = vmax.f32 %v1175, 0.0
      %v1240 = vmax.f32 %v1176, 0.0
      %v1241 = vmax.f32 %v1177, 0.0
      %v1242 = vmax.f32 %v1178, 0.0
      %v1243 = vmax.f32 %v1179, 0.0
      %v1244 = vmax.f32 %v1180, 0.0
      %v1245 = vmax.f32 %v1181, 0.0
      %v1246 = vmax.f32 %v1182, 0.0
      %v1247 = vmax.f32 %v1183, 0.0
      %v1248 = vmax.f32 %v1184, 0.0
      %v1249 = vmax.f32 %v1185, 0.0
      %v1250 = vmax.f32 %v1186, 0.0
      %v1251 = vmax.f32 %v1187, 0.0
      %v1252 = vmax.f32 %v1188, 0.0
      %v1253 = vmax.f32 %v1189, 0.0
      %v1254 = vmax.f32 %v1190, 0.0
      %v1255 = vmax.f32 %v1191, 0.0
      %v1256 = vmax.f32 %v1192, 0.0
      %v1257 = vmax.f32 %v1193, 0.0
      %v1258 = vmax.f32 %v1194, 0.0
      %v1259 = vmax.f32 %v1195, 0.0
      %v1260 = vmax.f32 %v1196, 0.0
      %v1261 = vmax.f32 %v1197, 0.0
      %v1262 = vmax.f32 %v1198, 0.0
      %v1263 = vmax.f32 %v1199, 0.0
      %v1264 = vmax.f32 %v1200, 0.0
      %v1265 = vmax.f32 %v1201, 0.0
      %v1266 = vmax.f32 %v1202, 0.0
      %v1267 = vmax.f32 %v1203, 0.0
      %v1268 = vmax.f32 %v1204, 0.0
      %v1269 = vmax.f32 %v1205, 0.0
      %v1270 = vmax.f32 %v1206, 0.0
      %v1271 = vmax.f32 %v1207, 0.0
      %v1272 = vmax.f32 %v1208, 0.0
      %v1273 = vmax.f32 %v1209, 0.0
      %v1274 = vmax.f32 %v1210, 0.0
      %v1275 = vmax.f32 %v1211, 0.0
      %v1276 = vmax.f32 %v1212, 0.0
      %v1277 = vmax.f32 %v1213, 0.0
      %v1278 = vmax.f32 %v1214, 0.0
      %v1279 = vmax.f32 %v1215, 0.0
      %v1280 = vmax.f32 %v1216, 0.0
      %v1281 = vmax.f32 %v1217, 0.0
      %v1282 = vmax.f32 %v1218, 0.0
      %v1283 = vmax.f32 %v1219, 0.0
      %1284 = vst [vmem:[#allocation3] sm:$0xff] %v1220
      %1285 = vst [vmem:[#allocation3 + $0x8] sm:$0xff] %v1221
      %1286 = vst [vmem:[#allocation3 + $0x10] sm:$0xff] %v1222
      %1287 = vst [vmem:[#allocation3 + $0x18] sm:$0xff] %v1223
      %1288 = vst [vmem:[#allocation3 + $0x20] sm:$0xff] %v1224
      %1289 = vst [vmem:[#allocation3 + $0x28] sm:$0xff] %v1225
      %1290 = vst [vmem:[#allocation3 + $0x30] sm:$0xff] %v1226
      %1291 = vst [vmem:[#allocation3 + $0x38] sm:$0xff] %v1227
      %1292 = vst [vmem:[#allocation3 + $0x40] sm:$0xff] %v1228
      %1293 = vst [vmem:[#allocation3 + $0x48] sm:$0xff] %v1229
      %1294 = vst [vmem:[#allocation3 + $0x50] sm:$0xff] %v1230
      %1295 = vst [vmem:[#allocation3 + $0x58] sm:$0xff] %v1231
      %1296 = vst [vmem:[#allocation3 + $0x60] sm:$0xff] %v1232
      %1297 = vst [vmem:[#allocation3 + $0x68] sm:$0xff] %v1233
      %1298 = vst [vmem:[#allocation3 + $0x70] sm:$0xff] %v1234
      %1299 = vst [vmem:[#allocation3 + $0x78] sm:$0xff] %v1235
      %1300 = vst [vmem:[#allocation3 + $0x80] sm:$0xff] %v1236
      %1301 = vst [vmem:[#allocation3 + $0x88] sm:$0xff] %v1237
      %1302 = vst [vmem:[#allocation3 + $0x90] sm:$0xff] %v1238
      %1303 = vst [vmem:[#allocation3 + $0x98] sm:$0xff] %v1239
      %1304 = vst [vmem:[#allocation3 + $0xa0] sm:$0xff] %v1240
      %1305 = vst [vmem:[#allocation3 + $0xa8] sm:$0xff] %v1241
      %1306 = vst [vmem:[#allocation3 + $0xb0] sm:$0xff] %v1242
      %1307 = vst [vmem:[#allocation3 + $0xb8] sm:$0xff] %v1243
      %1308 = vst [vmem:[#allocation3 + $0xc0] sm:$0xff] %v1244
      %1309 = vst [vmem:[#allocation3 + $0xc8] sm:$0xff] %v1245
      %1310 = vst [vmem:[#allocation3 + $0xd0] sm:$0xff] %v1246
      %1311 = vst [vmem:[#allocation3 + $0xd8] sm:$0xff] %v1247
      %1312 = vst [vmem:[#allocation3 + $0xe0] sm:$0xff] %v1248
      %1313 = vst [vmem:[#allocation3 + $0xe8] sm:$0xff] %v1249
      %1314 = vst [vmem:[#allocation3 + $0xf0] sm:$0xff] %v1250
      %1315 = vst [vmem:[#allocation3 + $0xf8] sm:$0xff] %v1251
      %1316 = vst [vmem:[#allocation3 + $0x100] sm:$0xff] %v1252
      %1317 = vst [vmem:[#allocation3 + $0x108] sm:$0xff] %v1253
      %1318 = vst [vmem:[#allocation3 + $0x110] sm:$0xff] %v1254
      %1319 = vst [vmem:[#allocation3 + $0x118] sm:$0xff] %v1255
      %1320 = vst [vmem:[#allocation3 + $0x120] sm:$0xff] %v1256
      %1321 = vst [vmem:[#allocation3 + $0x128] sm:$0xff] %v1257
      %1322 = vst [vmem:[#allocation3 + $0x130] sm:$0xff] %v1258
      %1323 = vst [vmem:[#allocation3 + $0x138] sm:$0xff] %v1259
      %1324 = vst [vmem:[#allocation3 + $0x140] sm:$0xff] %v1260
      %1325 = vst [vmem:[#allocation3 + $0x148] sm:$0xff] %v1261
      %1326 = vst [vmem:[#allocation3 + $0x150] sm:$0xff] %v1262
      %1327 = vst [vmem:[#allocation3 + $0x158] sm:$0xff] %v1263
      %1328 = vst [vmem:[#allocation3 + $0x160] sm:$0xff] %v1264
      %1329 = vst [vmem:[#allocation3 + $0x168] sm:$0xff] %v1265
      %1330 = vst [vmem:[#allocation3 + $0x170] sm:$0xff] %v1266
      %1331 = vst [vmem:[#allocation3 + $0x178] sm:$0xff] %v1267
      %1332 = vst [vmem:[#allocation3 + $0x180] sm:$0xff] %v1268
      %1333 = vst [vmem:[#allocation3 + $0x188] sm:$0xff] %v1269
      %1334 = vst [vmem:[#allocation3 + $0x190] sm:$0xff] %v1270
      %1335 = vst [vmem:[#allocation3 + $0x198] sm:$0xff] %v1271
      %1336 = vst [vmem:[#allocation3 + $0x1a0] sm:$0xff] %v1272
      %1337 = vst [vmem:[#allocation3 + $0x1a8] sm:$0xff] %v1273
      %1338 = vst [vmem:[#allocation3 + $0x1b0] sm:$0xff] %v1274
      %1339 = vst [vmem:[#allocation3 + $0x1b8] sm:$0xff] %v1275
      %1340 = vst [vmem:[#allocation3 + $0x1c0] sm:$0xff] %v1276
      %1341 = vst [vmem:[#allocation3 + $0x1c8] sm:$0xff] %v1277
      %1342 = vst [vmem:[#allocation3 + $0x1d0] sm:$0xff] %v1278
      %1343 = vst [vmem:[#allocation3 + $0x1d8] sm:$0xff] %v1279
      %1344 = vst [vmem:[#allocation3 + $0x1e0] sm:$0xff] %v1280
      %1345 = vst [vmem:[#allocation3 + $0x1e8] sm:$0xff] %v1281
      %1346 = vst [vmem:[#allocation3 + $0x1f0] sm:$0xff] %v1282
      %1347 = vst [vmem:[#allocation3 + $0x1f8] sm:$0xff] %v1283
    $region21: #{conv_im2col.1} parent=1 // pred_fallthru
      _
    // Predicated region
    $region22: #{conv_im2col.1} parent=1 // pred_check
      _
    $region23: #{conv_im2col.1} parent=1 // pred_check_branch
      %1349 = sbr.rel (0) target = $region25
    $region24: #{conv_im2col.1} parent=1 // pred_region
      %s1351 = ssub.s32 8192, 8192
      %1352 = vsyncadd [#allocation4], %s1351
      %s1353 = sshll.u32 [#allocation3], 4
      %s1354 = int_to_ptr.vmem [resolvable:$true] %s1353
      %1359 = dma.vmem_to_hbm [thread:$0]  %s1354, 8192, %s3, [#allocation4], 128, 128, 8
    $region25: #{conv_im2col.1} parent=1 // pred_fallthru
      _
    // Predicated region
    $region26: #{conv_im2col.1} parent=1 // pred_check
      _
    $region27: #{conv_im2col.1} parent=1 // pred_check_branch
      %1361 = sbr.rel (0) target = $region29
    $region28: #{conv_im2col.1} parent=1 // pred_region
      %1362 = dma.done [#allocation4], 8192
    $region29: #{conv_im2col.1} parent=1 // pred_fallthru
      _
    %1363 = vsyncpa [#allocation4], 1

</llo_original>
